<compile_context>
chip_gen: v7x
topology: tpu7x:2x2x1
jax: 0.10.0
libtpu: 0.0.40
codegen_flags: <defaults>
</compile_context>

<pallas_src>
import functools

import numpy as np
import jax
import jax.numpy as jnp
from jax import lax
from jax.experimental import pallas as pl
from jax.experimental.pallas import tpu as pltpu

EPS = 1e-5            # nn.BatchNorm2d default eps
NEG_SLOPE = 0.01      # nn.LeakyReLU default negative_slope
LANES = 128
VMEM_LIMIT_BYTES = 32 * 1024 * 1024   # safe on v5e/v6e/v7x; blocks here are tiny


def _round_up(x, m):
    return (x + m - 1) // m * m


def _mosaic_params():
    return pltpu.CompilerParams(dimension_semantics=("parallel",),
                                vmem_limit_bytes=VMEM_LIMIT_BYTES)


# ------------------------------- Pallas kernels -------------------------------

def _row_stats(o):
    # Per-lane (sum, sum-of-squares) over this image's rows, f32.  Cross-lane
    # (per-channel) reduction happens on the tiny result in JAX.
    s1 = jnp.sum(o, axis=0, keepdims=True)
    s2 = jnp.sum(o * o, axis=0, keepdims=True)
    return jnp.concatenate([s1, s2], axis=0)


def _conv13_kernel(x_ref, a_cur_ref, a_prev_ref, o_ref, st_ref):
    # Fused conv1|conv3 (stride 2, pad 1) for one image, as two MXU matmuls.
    x = x_ref[0]                                            # (OH, KA) matmul dtype
    zrow = jnp.zeros((1, x.shape[1]), x.dtype)
    prev = jnp.concatenate([zrow, x[:-1, :]], axis=0)       # super-row oh-1 (zero top pad)
    o = jnp.dot(x, a_cur_ref[...], preferred_element_type=jnp.float32)
    o = o + jnp.dot(prev, a_prev_ref[...], preferred_element_type=jnp.float32)
    o_ref[0] = o.astype(o_ref.dtype)                        # bf16 store
    st_ref[0] = _row_stats(o)                               # BN pass-1 partials (f32)


def _conv2_kernel(x13_ref, b0_ref, b1_ref, b2_ref, sc_ref, sh_ref, slope_ref,
                  o_ref, st_ref, *, op_dtype):
    # bn1 + LeakyReLU on the conv1 lanes (passthrough on the conv3 lanes, slope=1),
    # then conv2 (stride 1, pad 1) with the scale3*conv3 residual fused via the
    # diagonal block of b1.  Three MXU matmuls per image.
    x = x13_ref[0].astype(jnp.float32)                      # (OH, L13)
    y = x * sc_ref[...] + sh_ref[...]
    h = jnp.where(y > 0, y, slope_ref[...] * y).astype(op_dtype)
    zrow = jnp.zeros((1, h.shape[1]), h.dtype)
    up = jnp.concatenate([zrow, h[:-1, :]], axis=0)         # row oh-1 (zero top pad)
    dn = jnp.concatenate([h[1:, :], zrow], axis=0)          # row oh+1 (zero bottom pad)
    o = jnp.dot(h, b1_ref[...], preferred_element_type=jnp.float32)
    o = o + jnp.dot(up, b0_ref[...], preferred_element_type=jnp.float32)
    o = o + jnp.dot(dn, b2_ref[...], preferred_element_type=jnp.float32)
    o_ref[0] = o.astype(o_ref.dtype)                        # bf16 store
    st_ref[0] = _row_stats(o)                               # BN2 pass-1 partials


def _bn2_lrelu_kernel(x_ref, sc_ref, sh_ref, o_ref, *, out_lanes):
    # BN2 pass-2 + LeakyReLU; write only the useful lanes.
    x = x_ref[0].astype(jnp.float32)
    y = x * sc_ref[...] + sh_ref[...]
    y = jnp.where(y > 0, y, NEG_SLOPE * y)
    o_ref[0] = y[:, :out_lanes].astype(o_ref.dtype)


# ------------------------------- pallas_call glue ------------------------------

def _conv13_call(x_sr, a_cur, a_prev, *, store_dtype):
    n, oh, ka_p = x_sr.shape
    l13_p = a_cur.shape[1]
    return pl.pallas_call(
        _conv13_kernel,
        out_shape=(jax.ShapeDtypeStruct((n, oh, l13_p), store_dtype),
                   jax.ShapeDtypeStruct((n, 2, l13_p), jnp.float32)),
        grid=(n,),
        in_specs=[pl.BlockSpec((1, oh, ka_p), lambda i: (i, 0, 0)),
                  pl.BlockSpec((ka_p, l13_p), lambda i: (0, 0)),
                  pl.BlockSpec((ka_p, l13_p), lambda i: (0, 0))],
        out_specs=(pl.BlockSpec((1, oh, l13_p), lambda i: (i, 0, 0)),
                   pl.BlockSpec((1, 2, l13_p), lambda i: (i, 0, 0))),
        compiler_params=_mosaic_params(),
    )(x_sr, a_cur, a_prev)


def _conv2_call(out13, b0, b1, b2, sc, sh, slope, *, op_dtype, store_dtype):
    n, oh, l13_p = out13.shape
    l2_p = b1.shape[1]
    kernel = functools.partial(_conv2_kernel, op_dtype=op_dtype)
    return pl.pallas_call(
        kernel,
        out_shape=(jax.ShapeDtypeStruct((n, oh, l2_p), store_dtype),
                   jax.ShapeDtypeStruct((n, 2, l2_p), jnp.float32)),
        grid=(n,),
        in_specs=[pl.BlockSpec((1, oh, l13_p), lambda i: (i, 0, 0)),
                  pl.BlockSpec((l13_p, l2_p), lambda i: (0, 0)),
                  pl.BlockSpec((l13_p, l2_p), lambda i: (0, 0)),
                  pl.BlockSpec((l13_p, l2_p), lambda i: (0, 0)),
                  pl.BlockSpec((1, l13_p), lambda i: (0, 0)),
                  pl.BlockSpec((1, l13_p), lambda i: (0, 0)),
                  pl.BlockSpec((1, l13_p), lambda i: (0, 0))],
        out_specs=(pl.BlockSpec((1, oh, l2_p), lambda i: (i, 0, 0)),
                   pl.BlockSpec((1, 2, l2_p), lambda i: (i, 0, 0))),
        compiler_params=_mosaic_params(),
    )(out13, b0, b1, b2, sc, sh, slope)


def _bn2_lrelu_call(out2, sc, sh, *, out_lanes, out_dtype):
    n, oh, l2_p = out2.shape
    kernel = functools.partial(_bn2_lrelu_kernel, out_lanes=out_lanes)
    return pl.pallas_call(
        kernel,
        out_shape=jax.ShapeDtypeStruct((n, oh, out_lanes), out_dtype),
        grid=(n,),
        in_specs=[pl.BlockSpec((1, oh, l2_p), lambda i: (i, 0, 0)),
                  pl.BlockSpec((1, l2_p), lambda i: (0, 0)),
                  pl.BlockSpec((1, l2_p), lambda i: (0, 0))],
        out_specs=pl.BlockSpec((1, oh, out_lanes), lambda i: (i, 0, 0)),
        compiler_params=_mosaic_params(),
    )(out2, sc, sh)


# ------------------------------- JAX-side helpers ------------------------------

def _toeplitz_row(w_row, w_in, ow_n, stride, pad):
    """Banded matrix (w_in*Cin, ow_n*Cout) for one kernel row.

    Entry [(iw*Cin + ic), (ow*Cout + oc)] = w_row[oc, ic, iw - stride*ow + pad]
    (zero when the tap falls outside the kernel, which also realizes the
    W-direction zero padding for free)."""
    cout, cin, k = w_row.shape
    iw = np.arange(w_in)[:, None]
    ow = np.arange(ow_n)[None, :]
    j = iw - stride * ow + pad                              # (w_in, ow_n), static
    valid = (j >= 0) & (j < k)
    jc = np.clip(j, 0, k - 1)
    blk = w_row[:, :, jc]                                   # (Cout, Cin, w_in, ow_n)
    blk = jnp.where(jnp.asarray(valid)[None, None], blk, 0.0)
    blk = jnp.transpose(blk, (2, 1, 3, 0))                  # (w_in, Cin, ow_n, Cout)
    return blk.reshape(w_in * cin, ow_n * cout)


def _build_a_mats(w1, w3, W, cin, OW, cout, pad, ka_pad, l13_pad, dtype):
    wc = W * cin
    l2 = OW * cout

    def taps(i):  # (wc, 2*l2): conv1 columns first, then conv3
        return jnp.concatenate([_toeplitz_row(w1[:, :, i, :], W, OW, 2, pad),
                                _toeplitz_row(w3[:, :, i, :], W, OW, 2, pad)], axis=1)

    a_cur = jnp.concatenate([taps(1), taps(2)], axis=0)     # [even | odd] rows of super-row oh
    a_prev = jnp.concatenate([jnp.zeros((wc, 2 * l2), jnp.float32), taps(0)], axis=0)
    a_cur = jnp.pad(a_cur, ((0, ka_pad - 2 * wc), (0, l13_pad - 2 * l2)))
    a_prev = jnp.pad(a_prev, ((0, ka_pad - 2 * wc), (0, l13_pad - 2 * l2)))
    return a_cur.astype(dtype), a_prev.astype(dtype)


def _build_b_mats(w2, OW, cout, pad, scale3, l13_pad, l2_pad, dtype):
    l2 = OW * cout

    def tap(i):
        return _toeplitz_row(w2[:, :, i, :], OW, OW, 1, pad)   # (l2, l2)

    b0 = jnp.pad(tap(0), ((0, l13_pad - l2), (0, l2_pad - l2)))
    b2 = jnp.pad(tap(2), ((0, l13_pad - l2), (0, l2_pad - l2)))
    # Center tap + fused bn3 residual: rows [l2, 2*l2) carry scale3 on the diagonal.
    b1 = jnp.concatenate([tap(1), jnp.diag(jnp.tile(scale3, OW))], axis=0)
    b1 = jnp.pad(b1, ((0, l13_pad - 2 * l2), (0, l2_pad - l2)))
    return b0.astype(dtype), b1.astype(dtype), b2.astype(dtype)


def _bn_scale_shift(s_sum, s_sq, count, gamma, beta):
    # Biases were dropped from the convs (BN cancels them), so the per-channel
    # means are small and E[x^2]-mean^2 in f32 is well conditioned here.
    mean = s_sum / count
    var = jnp.maximum(s_sq / count - mean * mean, 0.0)
    scale = gamma * lax.rsqrt(var + EPS)
    return scale, beta - mean * scale


def _pad_lanes(v, total):
    return jnp.pad(v.astype(jnp.float32), (0, total - v.shape[0])).reshape(1, total)


# ------------------------------- ConvBlock2 forward ----------------------------

def conv_block2_forward(x_nchw, p, *, matmul_dtype=jnp.bfloat16):
    N, cin, H, W = x_nchw.shape
    cout, _, k, _ = p['w1'].shape
    assert k == 3, "only kernel_size=3 implemented"
    assert H % 2 == 0 and W % 2 == 0, "even spatial dims required"
    pad = 1
    OH, OW = H // 2, W // 2
    ka = 2 * W * cin                    # one input super-row (two image rows) in lanes
    ka_p = _round_up(ka, LANES)
    l2 = OW * cout                      # one output row per conv in lanes
    l13_p = _round_up(2 * l2, LANES)
    l2_p = _round_up(l2, LANES)
    count = N * OH * OW

    # ---- stage A: fused conv1|conv3 (stride 2) + BN pass-1 partials ----------
    # NCHW -> NHWC (the one unavoidable input relayout) -> free reshape to super-rows.
    x_sr = jnp.transpose(x_nchw, (0, 2, 3, 1)).reshape(N, OH, ka)
    x_sr = jnp.pad(x_sr, ((0, 0), (0, 0), (0, ka_p - ka))).astype(matmul_dtype)
    a_cur, a_prev = _build_a_mats(p['w1'], p['w3'], W, cin, OW, cout, pad,
                                  ka_p, l13_p, matmul_dtype)
    out13, st13 = _conv13_call(x_sr, a_cur, a_prev, store_dtype=matmul_dtype)

    st = jnp.sum(st13, axis=0)                               # (2, l13_p)
    sums = st[0, :2 * l2].reshape(2, OW, cout).sum(axis=1)   # [conv1, conv3] per-channel
    sqs = st[1, :2 * l2].reshape(2, OW, cout).sum(axis=1)
    scale1, shift1 = _bn_scale_shift(sums[0], sqs[0], count, p['g1'], p['be1'])
    scale3, _ = _bn_scale_shift(sums[1], sqs[1], count, p['g3'], p['be3'])
    # conv biases and bn3's shift are constant per-channel offsets; training-mode
    # bn1/bn2 cancel them exactly, so they are dropped everywhere.

    # ---- stage B: bn1+LeakyReLU, conv2 (stride 1), fused scale3*conv3 residual
    sc1_l = _pad_lanes(jnp.concatenate([jnp.tile(scale1, OW),
                                        jnp.ones((l2,), jnp.float32)]), l13_p)
    sh1_l = _pad_lanes(jnp.tile(shift1, OW), l13_p)
    slope_l = jnp.concatenate([jnp.full((l2,), NEG_SLOPE, jnp.float32),
                               jnp.ones((l13_p - l2,), jnp.float32)]).reshape(1, l13_p)
    b0, b1, b2 = _build_b_mats(p['w2'], OW, cout, pad, scale3, l13_p, l2_p, matmul_dtype)
    out2, st2 = _conv2_call(out13, b0, b1, b2, sc1_l, sh1_l, slope_l,
                            op_dtype=matmul_dtype, store_dtype=matmul_dtype)

    st2s = jnp.sum(st2, axis=0)
    sum2 = st2s[0, :l2].reshape(OW, cout).sum(axis=0)
    sq2 = st2s[1, :l2].reshape(OW, cout).sum(axis=0)
    scale2, shift2 = _bn_scale_shift(sum2, sq2, count, p['g2'], p['be2'])

    # ---- stage C: bn2 + LeakyReLU (write only the useful lanes) ---------------
    sc2_l = _pad_lanes(jnp.tile(scale2, OW), l2_p)
    sh2_l = _pad_lanes(jnp.tile(shift2, OW), l2_p)
    out = _bn2_lrelu_call(out2, sc2_l, sh2_l, out_lanes=l2, out_dtype=jnp.float32)
    out = out.reshape(N, OH, OW, cout)
    return jnp.transpose(out, (0, 3, 1, 2))                  # NHWC -> NCHW


# ------------------------------- pure-JAX reference ----------------------------

def _reference(x, p):
    def conv(x, w, b, s):
        y = lax.conv_general_dilated(x, w, (s, s), ((1, 1), (1, 1)),
                                     dimension_numbers=('NCHW', 'OIHW', 'NCHW'))
        return y + b.reshape(1, -1, 1, 1)

    def bn(x, g, b):
        mean = jnp.mean(x, axis=(0, 2, 3), keepdims=True)
        var = jnp.mean(jnp.square(x - mean), axis=(0, 2, 3), keepdims=True)
        return (x - mean) * lax.rsqrt(var + EPS) * g.reshape(1, -1, 1, 1) + b.reshape(1, -1, 1, 1)

    def lrelu(x):
        return jnp.where(x > 0, x, NEG_SLOPE * x)

    tmp = bn(conv(x, p['w3'], p['b3'], 2), p['g3'], p['be3'])
    h = lrelu(bn(conv(x, p['w1'], p['b1'], 2), p['g1'], p['be1']))
    h = conv(h, p['w2'], p['b2'], 1) + tmp
    return lrelu(bn(h, p['g2'], p['be2']))


# ------------------------------------ main -------------------------------------

if __name__ == "__main__":
    key = jax.random.PRNGKey(0)
    N, Cin, Cout, H, W, K = 2, 4, 8, 16, 16, 3

    ks = jax.random.split(key, 12)
    params = {
        'w1': jax.random.normal(ks[0], (Cout, Cin, K, K), jnp.float32) * 0.1,
        'b1': jax.random.normal(ks[1], (Cout,), jnp.float32) * 0.1,
        'w2': jax.random.normal(ks[2], (Cout, Cout, K, K), jnp.float32) * 0.1,
        'b2': jax.random.normal(ks[3], (Cout,), jnp.float32) * 0.1,
        'w3': jax.random.normal(ks[4], (Cout, Cin, K, K), jnp.float32) * 0.1,
        'b3': jax.random.normal(ks[5], (Cout,), jnp.float32) * 0.1,
        'g1': 1.0 + 0.1 * jax.random.normal(ks[6], (Cout,), jnp.float32),
        'be1': 0.1 * jax.random.normal(ks[7], (Cout,), jnp.float32),
        'g2': 1.0 + 0.1 * jax.random.normal(ks[8], (Cout,), jnp.float32),
        'be2': 0.1 * jax.random.normal(ks[9], (Cout,), jnp.float32),
        'g3': 1.0 + 0.1 * jax.random.normal(ks[10], (Cout,), jnp.float32),
        'be3': 0.1 * jax.random.normal(ks[11], (Cout,), jnp.float32),
    }
    x = jax.random.normal(key, (N, Cin, H, W), jnp.float32)

    fwd = jax.jit(conv_block2_forward, static_argnames=("matmul_dtype",))
    ref = jax.block_until_ready(_reference(x, params))

    # Structural correctness check with f32 MXU operands / f32 intermediates.
    out_f32 = jax.block_until_ready(fwd(x, params, matmul_dtype=jnp.float32))
    assert out_f32.shape == (N, Cout, H // 2, W // 2), out_f32.shape
    assert jnp.allclose(out_f32, ref, atol=2e-3, rtol=2e-3), "f32 path mismatch vs reference"

    # Default fast path: bf16 MXU operands + bf16 intermediates, f32 accumulation.
    out = jax.block_until_ready(fwd(x, params, matmul_dtype=jnp.bfloat16))
    assert out.shape == (N, Cout, H // 2, W // 2), out.shape
    assert jnp.allclose(out, ref, atol=5e-2, rtol=5e-2), "bf16 path mismatch vs reference"

    print("KERNEL_OK")
</pallas_src>

<mosaic_0001>
module attributes {stable_mosaic.version = 11 : i64} {
  func.func @_conv13_kernel(%arg0: i32, %arg1: memref<1x8x128xf32, #tpu.memory_space<vmem>>, %arg2: memref<128x128xf32, #tpu.memory_space<vmem>>, %arg3: memref<128x128xf32, #tpu.memory_space<vmem>>, %arg4: memref<1x8x128xf32, #tpu.memory_space<vmem>>, %arg5: memref<1x2x128xf32, #tpu.memory_space<vmem>>) attributes {dimension_semantics = [#tpu.dimension_semantics<parallel>], iteration_bounds = array<i64: 2>, scalar_prefetch = 0 : i64, scratch_operands = 0 : i64, tpu.core_type = #tpu.core_type<tc>, window_params = [{transform_indices = @transform_0, window_bounds = array<i64: 1, 8, 128>}, {pipeline_mode = #tpu.pipeline_mode<synchronous>, transform_indices = @transform_1, window_bounds = array<i64: 128, 128>}, {pipeline_mode = #tpu.pipeline_mode<synchronous>, transform_indices = @transform_2, window_bounds = array<i64: 128, 128>}, {transform_indices = @transform_3, window_bounds = array<i64: 1, 8, 128>}, {transform_indices = @transform_4, window_bounds = array<i64: 1, 2, 128>}]} {
    %c0 = arith.constant 0 : index
    %c0_0 = arith.constant 0 : index
    %c0_1 = arith.constant 0 : index
    %0 = vector.load %arg1[%c0, %c0_0, %c0_1] : memref<1x8x128xf32, #tpu.memory_space<vmem>>, vector<1x8x128xf32>
    %1 = vector.shape_cast %0 : vector<1x8x128xf32> to vector<8x128xf32>
    %cst = arith.constant 0.000000e+00 : f32
    %2 = vector.broadcast %cst : f32 to vector<1x128xf32>
    %3 = vector.extract_strided_slice %1 {offsets = [0, 0], sizes = [7, 128], strides = [1, 1]} : vector<8x128xf32> to vector<7x128xf32>
    %4 = tpu.concatenate %2, %3 in 0 : vector<1x128xf32>, vector<7x128xf32> -> vector<8x128xf32>
    %c0_2 = arith.constant 0 : index
    %c0_3 = arith.constant 0 : index
    %5 = vector.load %arg2[%c0_2, %c0_3] : memref<128x128xf32, #tpu.memory_space<vmem>>, vector<128x128xf32>
    %cst_4 = arith.constant dense<0.000000e+00> : vector<8x128xf32>
    %6 = tpu.matmul %1, %5, %cst_4 {dimension_numbers = #tpu.dot_dimension_numbers<[1], [0], [0], [1], [0, 0, 1, 1], [], []>} : vector<8x128xf32>, vector<128x128xf32>, vector<8x128xf32> -> vector<8x128xf32>
    %c0_5 = arith.constant 0 : index
    %c0_6 = arith.constant 0 : index
    %7 = vector.load %arg3[%c0_5, %c0_6] : memref<128x128xf32, #tpu.memory_space<vmem>>, vector<128x128xf32>
    %cst_7 = arith.constant dense<0.000000e+00> : vector<8x128xf32>
    %8 = tpu.matmul %4, %7, %cst_7 {dimension_numbers = #tpu.dot_dimension_numbers<[1], [0], [0], [1], [0, 0, 1, 1], [], []>} : vector<8x128xf32>, vector<128x128xf32>, vector<8x128xf32> -> vector<8x128xf32>
    %9 = arith.addf %6, %8 : vector<8x128xf32>
    %c0_8 = arith.constant 0 : index
    %c0_9 = arith.constant 0 : index
    %c0_10 = arith.constant 0 : index
    %10 = vector.load %arg4[%c0_8, %c0_9, %c0_10] : memref<1x8x128xf32, #tpu.memory_space<vmem>>, vector<1x8x128xf32>
    %11 = vector.shape_cast %10 : vector<1x8x128xf32> to vector<8x128xf32>
    %12 = vector.shape_cast %9 : vector<8x128xf32> to vector<1x8x128xf32>
    tpu.vector_store %arg4[%c0_8, %c0_9, %c0_10], %12 {strides = array<i32>} : memref<1x8x128xf32, #tpu.memory_space<vmem>>, vector<1x8x128xf32>,
    %cst_11 = arith.constant dense<0.000000e+00> : vector<128xf32>
    %13 = vector.multi_reduction <add>, %9, %cst_11 [0] : vector<8x128xf32> to vector<128xf32>
    %14 = vector.shape_cast %13 : vector<128xf32> to vector<1x128xf32>
    %15 = arith.mulf %9, %9 : vector<8x128xf32>
    %cst_12 = arith.constant dense<0.000000e+00> : vector<128xf32>
    %16 = vector.multi_reduction <add>, %15, %cst_12 [0] : vector<8x128xf32> to vector<128xf32>
    %17 = vector.shape_cast %16 : vector<128xf32> to vector<1x128xf32>
    %18 = tpu.concatenate %14, %17 in 0 : vector<1x128xf32>, vector<1x128xf32> -> vector<2x128xf32>
    %c0_13 = arith.constant 0 : index
    %c0_14 = arith.constant 0 : index
    %c0_15 = arith.constant 0 : index
    %19 = vector.load %arg5[%c0_13, %c0_14, %c0_15] : memref<1x2x128xf32, #tpu.memory_space<vmem>>, vector<1x2x128xf32>
    %20 = vector.shape_cast %19 : vector<1x2x128xf32> to vector<2x128xf32>
    %21 = vector.shape_cast %18 : vector<2x128xf32> to vector<1x2x128xf32>
    tpu.vector_store %arg5[%c0_13, %c0_14, %c0_15], %21 {strides = array<i32>} : memref<1x2x128xf32, #tpu.memory_space<vmem>>, vector<1x2x128xf32>,
    return
  }
  func.func @transform_0(%arg0: i32) -> (i32, i32, i32) {
    %c0_i32 = arith.constant 0 : i32
    %c0_i32_0 = arith.constant 0 : i32
    %c0_i32_1 = arith.constant 0 : i32
    return %arg0, %c0_i32, %c0_i32_0 : i32, i32, i32
  }
  func.func @transform_1(%arg0: i32) -> (i32, i32) {
    %c0_i32 = arith.constant 0 : i32
    %c0_i32_0 = arith.constant 0 : i32
    %c0_i32_1 = arith.constant 0 : i32
    return %c0_i32, %c0_i32_0 : i32, i32
  }
  func.func @transform_2(%arg0: i32) -> (i32, i32) {
    %c0_i32 = arith.constant 0 : i32
    %c0_i32_0 = arith.constant 0 : i32
    %c0_i32_1 = arith.constant 0 : i32
    return %c0_i32, %c0_i32_0 : i32, i32
  }
  func.func @transform_3(%arg0: i32) -> (i32, i32, i32) {
    %c0_i32 = arith.constant 0 : i32
    %c0_i32_0 = arith.constant 0 : i32
    %c0_i32_1 = arith.constant 0 : i32
    return %arg0, %c0_i32, %c0_i32_0 : i32, i32, i32
  }
  func.func @transform_4(%arg0: i32) -> (i32, i32, i32) {
    %c0_i32 = arith.constant 0 : i32
    %c0_i32_0 = arith.constant 0 : i32
    %c0_i32_1 = arith.constant 0 : i32
    return %arg0, %c0_i32, %c0_i32_0 : i32, i32, i32
  }
}

module attributes {stable_mosaic.version = 11 : i64} {
  func.func @_conv2_kernel(%arg0: i32, %arg1: memref<1x8x128xf32, #tpu.memory_space<vmem>>, %arg2: memref<128x128xf32, #tpu.memory_space<vmem>>, %arg3: memref<128x128xf32, #tpu.memory_space<vmem>>, %arg4: memref<128x128xf32, #tpu.memory_space<vmem>>, %arg5: memref<1x128xf32, #tpu.memory_space<vmem>>, %arg6: memref<1x128xf32, #tpu.memory_space<vmem>>, %arg7: memref<1x128xf32, #tpu.memory_space<vmem>>, %arg8: memref<1x8x128xf32, #tpu.memory_space<vmem>>, %arg9: memref<1x2x128xf32, #tpu.memory_space<vmem>>) attributes {dimension_semantics = [#tpu.dimension_semantics<parallel>], iteration_bounds = array<i64: 2>, scalar_prefetch = 0 : i64, scratch_operands = 0 : i64, tpu.core_type = #tpu.core_type<tc>, window_params = [{transform_indices = @transform_0, window_bounds = array<i64: 1, 8, 128>}, {pipeline_mode = #tpu.pipeline_mode<synchronous>, transform_indices = @transform_1, window_bounds = array<i64: 128, 128>}, {pipeline_mode = #tpu.pipeline_mode<synchronous>, transform_indices = @transform_2, window_bounds = array<i64: 128, 128>}, {pipeline_mode = #tpu.pipeline_mode<synchronous>, transform_indices = @transform_3, window_bounds = array<i64: 128, 128>}, {pipeline_mode = #tpu.pipeline_mode<synchronous>, transform_indices = @transform_4, window_bounds = array<i64: 1, 128>}, {pipeline_mode = #tpu.pipeline_mode<synchronous>, transform_indices = @transform_5, window_bounds = array<i64: 1, 128>}, {pipeline_mode = #tpu.pipeline_mode<synchronous>, transform_indices = @transform_6, window_bounds = array<i64: 1, 128>}, {transform_indices = @transform_7, window_bounds = array<i64: 1, 8, 128>}, {transform_indices = @transform_8, window_bounds = array<i64: 1, 2, 128>}]} {
    %c0 = arith.constant 0 : index
    %c0_0 = arith.constant 0 : index
    %c0_1 = arith.constant 0 : index
    %0 = vector.load %arg1[%c0, %c0_0, %c0_1] : memref<1x8x128xf32, #tpu.memory_space<vmem>>, vector<1x8x128xf32>
    %1 = vector.shape_cast %0 : vector<1x8x128xf32> to vector<8x128xf32>
    %c0_2 = arith.constant 0 : index
    %c0_3 = arith.constant 0 : index
    %2 = vector.load %arg5[%c0_2, %c0_3] : memref<1x128xf32, #tpu.memory_space<vmem>>, vector<1x128xf32>
    %3 = vector.broadcast %2 : vector<1x128xf32> to vector<8x128xf32>
    %4 = arith.mulf %1, %3 : vector<8x128xf32>
    %c0_4 = arith.constant 0 : index
    %c0_5 = arith.constant 0 : index
    %5 = vector.load %arg6[%c0_4, %c0_5] : memref<1x128xf32, #tpu.memory_space<vmem>>, vector<1x128xf32>
    %6 = vector.broadcast %5 : vector<1x128xf32> to vector<8x128xf32>
    %7 = arith.addf %4, %6 : vector<8x128xf32>
    %cst = arith.constant 0.000000e+00 : f32
    %8 = vector.broadcast %cst : f32 to vector<8x128xf32>
    %9 = arith.cmpf ogt, %7, %8 : vector<8x128xf32>
    %c0_6 = arith.constant 0 : index
    %c0_7 = arith.constant 0 : index
    %10 = vector.load %arg7[%c0_6, %c0_7] : memref<1x128xf32, #tpu.memory_space<vmem>>, vector<1x128xf32>
    %11 = vector.broadcast %10 : vector<1x128xf32> to vector<8x128xf32>
    %12 = arith.mulf %11, %7 : vector<8x128xf32>
    %13 = arith.select %9, %7, %12 : vector<8x128xi1>, vector<8x128xf32>
    %cst_8 = arith.constant 0.000000e+00 : f32
    %14 = vector.broadcast %cst_8 : f32 to vector<1x128xf32>
    %15 = vector.extract_strided_slice %13 {offsets = [0, 0], sizes = [7, 128], strides = [1, 1]} : vector<8x128xf32> to vector<7x128xf32>
    %16 = tpu.concatenate %14, %15 in 0 : vector<1x128xf32>, vector<7x128xf32> -> vector<8x128xf32>
    %17 = vector.extract_strided_slice %13 {offsets = [1, 0], sizes = [7, 128], strides = [1, 1]} : vector<8x128xf32> to vector<7x128xf32>
    %18 = tpu.concatenate %17, %14 in 0 : vector<7x128xf32>, vector<1x128xf32> -> vector<8x128xf32>
    %c0_9 = arith.constant 0 : index
    %c0_10 = arith.constant 0 : index
    %19 = vector.load %arg3[%c0_9, %c0_10] : memref<128x128xf32, #tpu.memory_space<vmem>>, vector<128x128xf32>
    %cst_11 = arith.constant dense<0.000000e+00> : vector<8x128xf32>
    %20 = tpu.matmul %13, %19, %cst_11 {dimension_numbers = #tpu.dot_dimension_numbers<[1], [0], [0], [1], [0, 0, 1, 1], [], []>} : vector<8x128xf32>, vector<128x128xf32>, vector<8x128xf32> -> vector<8x128xf32>
    %c0_12 = arith.constant 0 : index
    %c0_13 = arith.constant 0 : index
    %21 = vector.load %arg2[%c0_12, %c0_13] : memref<128x128xf32, #tpu.memory_space<vmem>>, vector<128x128xf32>
    %cst_14 = arith.constant dense<0.000000e+00> : vector<8x128xf32>
    %22 = tpu.matmul %16, %21, %cst_14 {dimension_numbers = #tpu.dot_dimension_numbers<[1], [0], [0], [1], [0, 0, 1, 1], [], []>} : vector<8x128xf32>, vector<128x128xf32>, vector<8x128xf32> -> vector<8x128xf32>
    %23 = arith.addf %20, %22 : vector<8x128xf32>
    %c0_15 = arith.constant 0 : index
    %c0_16 = arith.constant 0 : index
    %24 = vector.load %arg4[%c0_15, %c0_16] : memref<128x128xf32, #tpu.memory_space<vmem>>, vector<128x128xf32>
    %cst_17 = arith.constant dense<0.000000e+00> : vector<8x128xf32>
    %25 = tpu.matmul %18, %24, %cst_17 {dimension_numbers = #tpu.dot_dimension_numbers<[1], [0], [0], [1], [0, 0, 1, 1], [], []>} : vector<8x128xf32>, vector<128x128xf32>, vector<8x128xf32> -> vector<8x128xf32>
    %26 = arith.addf %23, %25 : vector<8x128xf32>
    %c0_18 = arith.constant 0 : index
    %c0_19 = arith.constant 0 : index
    %c0_20 = arith.constant 0 : index
    %27 = vector.load %arg8[%c0_18, %c0_19, %c0_20] : memref<1x8x128xf32, #tpu.memory_space<vmem>>, vector<1x8x128xf32>
    %28 = vector.shape_cast %27 : vector<1x8x128xf32> to vector<8x128xf32>
    %29 = vector.shape_cast %26 : vector<8x128xf32> to vector<1x8x128xf32>
    tpu.vector_store %arg8[%c0_18, %c0_19, %c0_20], %29 {strides = array<i32>} : memref<1x8x128xf32, #tpu.memory_space<vmem>>, vector<1x8x128xf32>,
    %cst_21 = arith.constant dense<0.000000e+00> : vector<128xf32>
    %30 = vector.multi_reduction <add>, %26, %cst_21 [0] : vector<8x128xf32> to vector<128xf32>
    %31 = vector.shape_cast %30 : vector<128xf32> to vector<1x128xf32>
    %32 = arith.mulf %26, %26 : vector<8x128xf32>
    %cst_22 = arith.constant dense<0.000000e+00> : vector<128xf32>
    %33 = vector.multi_reduction <add>, %32, %cst_22 [0] : vector<8x128xf32> to vector<128xf32>
    %34 = vector.shape_cast %33 : vector<128xf32> to vector<1x128xf32>
    %35 = tpu.concatenate %31, %34 in 0 : vector<1x128xf32>, vector<1x128xf32> -> vector<2x128xf32>
    %c0_23 = arith.constant 0 : index
    %c0_24 = arith.constant 0 : index
    %c0_25 = arith.constant 0 : index
    %36 = vector.load %arg9[%c0_23, %c0_24, %c0_25] : memref<1x2x128xf32, #tpu.memory_space<vmem>>, vector<1x2x128xf32>
    %37 = vector.shape_cast %36 : vector<1x2x128xf32> to vector<2x128xf32>
    %38 = vector.shape_cast %35 : vector<2x128xf32> to vector<1x2x128xf32>
    tpu.vector_store %arg9[%c0_23, %c0_24, %c0_25], %38 {strides = array<i32>} : memref<1x2x128xf32, #tpu.memory_space<vmem>>, vector<1x2x128xf32>,
    return
  }
  func.func @transform_0(%arg0: i32) -> (i32, i32, i32) {
    %c0_i32 = arith.constant 0 : i32
    %c0_i32_0 = arith.constant 0 : i32
    %c0_i32_1 = arith.constant 0 : i32
    return %arg0, %c0_i32, %c0_i32_0 : i32, i32, i32
  }
  func.func @transform_1(%arg0: i32) -> (i32, i32) {
    %c0_i32 = arith.constant 0 : i32
    %c0_i32_0 = arith.constant 0 : i32
    %c0_i32_1 = arith.constant 0 : i32
    return %c0_i32, %c0_i32_0 : i32, i32
  }
  func.func @transform_2(%arg0: i32) -> (i32, i32) {
    %c0_i32 = arith.constant 0 : i32
    %c0_i32_0 = arith.constant 0 : i32
    %c0_i32_1 = arith.constant 0 : i32
    return %c0_i32, %c0_i32_0 : i32, i32
  }
  func.func @transform_3(%arg0: i32) -> (i32, i32) {
    %c0_i32 = arith.constant 0 : i32
    %c0_i32_0 = arith.constant 0 : i32
    %c0_i32_1 = arith.constant 0 : i32
    return %c0_i32, %c0_i32_0 : i32, i32
  }
  func.func @transform_4(%arg0: i32) -> (i32, i32) {
    %c0_i32 = arith.constant 0 : i32
    %c0_i32_0 = arith.constant 0 : i32
    %c0_i32_1 = arith.constant 0 : i32
    return %c0_i32, %c0_i32_0 : i32, i32
  }
  func.func @transform_5(%arg0: i32) -> (i32, i32) {
    %c0_i32 = arith.constant 0 : i32
    %c0_i32_0 = arith.constant 0 : i32
    %c0_i32_1 = arith.constant 0 : i32
    return %c0_i32, %c0_i32_0 : i32, i32
  }
  func.func @transform_6(%arg0: i32) -> (i32, i32) {
    %c0_i32 = arith.constant 0 : i32
    %c0_i32_0 = arith.constant 0 : i32
    %c0_i32_1 = arith.constant 0 : i32
    return %c0_i32, %c0_i32_0 : i32, i32
  }
  func.func @transform_7(%arg0: i32) -> (i32, i32, i32) {
    %c0_i32 = arith.constant 0 : i32
    %c0_i32_0 = arith.constant 0 : i32
    %c0_i32_1 = arith.constant 0 : i32
    return %arg0, %c0_i32, %c0_i32_0 : i32, i32, i32
  }
  func.func @transform_8(%arg0: i32) -> (i32, i32, i32) {
    %c0_i32 = arith.constant 0 : i32
    %c0_i32_0 = arith.constant 0 : i32
    %c0_i32_1 = arith.constant 0 : i32
    return %arg0, %c0_i32, %c0_i32_0 : i32, i32, i32
  }
}

module attributes {stable_mosaic.version = 11 : i64} {
  func.func @_bn2_lrelu_kernel(%arg0: i32, %arg1: memref<1x8x128xf32, #tpu.memory_space<vmem>>, %arg2: memref<1x128xf32, #tpu.memory_space<vmem>>, %arg3: memref<1x128xf32, #tpu.memory_space<vmem>>, %arg4: memref<1x8x64xf32, #tpu.memory_space<vmem>>) attributes {dimension_semantics = [#tpu.dimension_semantics<parallel>], iteration_bounds = array<i64: 2>, scalar_prefetch = 0 : i64, scratch_operands = 0 : i64, tpu.core_type = #tpu.core_type<tc>, window_params = [{transform_indices = @transform_0, window_bounds = array<i64: 1, 8, 128>}, {pipeline_mode = #tpu.pipeline_mode<synchronous>, transform_indices = @transform_1, window_bounds = array<i64: 1, 128>}, {pipeline_mode = #tpu.pipeline_mode<synchronous>, transform_indices = @transform_2, window_bounds = array<i64: 1, 128>}, {transform_indices = @transform_3, window_bounds = array<i64: 1, 8, 64>}]} {
    %c0 = arith.constant 0 : index
    %c0_0 = arith.constant 0 : index
    %c0_1 = arith.constant 0 : index
    %0 = vector.load %arg1[%c0, %c0_0, %c0_1] : memref<1x8x128xf32, #tpu.memory_space<vmem>>, vector<1x8x128xf32>
    %1 = vector.shape_cast %0 : vector<1x8x128xf32> to vector<8x128xf32>
    %c0_2 = arith.constant 0 : index
    %c0_3 = arith.constant 0 : index
    %2 = vector.load %arg2[%c0_2, %c0_3] : memref<1x128xf32, #tpu.memory_space<vmem>>, vector<1x128xf32>
    %3 = vector.broadcast %2 : vector<1x128xf32> to vector<8x128xf32>
    %4 = arith.mulf %1, %3 : vector<8x128xf32>
    %c0_4 = arith.constant 0 : index
    %c0_5 = arith.constant 0 : index
    %5 = vector.load %arg3[%c0_4, %c0_5] : memref<1x128xf32, #tpu.memory_space<vmem>>, vector<1x128xf32>
    %6 = vector.broadcast %5 : vector<1x128xf32> to vector<8x128xf32>
    %7 = arith.addf %4, %6 : vector<8x128xf32>
    %cst = arith.constant 0.000000e+00 : f32
    %8 = vector.broadcast %cst : f32 to vector<8x128xf32>
    %9 = arith.cmpf ogt, %7, %8 : vector<8x128xf32>
    %cst_6 = arith.constant 0.00999999977 : f32
    %10 = vector.broadcast %cst_6 : f32 to vector<8x128xf32>
    %11 = arith.mulf %10, %7 : vector<8x128xf32>
    %12 = arith.select %9, %7, %11 : vector<8x128xi1>, vector<8x128xf32>
    %13 = vector.extract_strided_slice %12 {offsets = [0, 0], sizes = [8, 64], strides = [1, 1]} : vector<8x128xf32> to vector<8x64xf32>
    %c0_7 = arith.constant 0 : index
    %c0_8 = arith.constant 0 : index
    %c0_9 = arith.constant 0 : index
    %14 = vector.load %arg4[%c0_7, %c0_8, %c0_9] : memref<1x8x64xf32, #tpu.memory_space<vmem>>, vector<1x8x64xf32>
    %15 = vector.shape_cast %14 : vector<1x8x64xf32> to vector<8x64xf32>
    %16 = vector.shape_cast %13 : vector<8x64xf32> to vector<1x8x64xf32>
    tpu.vector_store %arg4[%c0_7, %c0_8, %c0_9], %16 {strides = array<i32>} : memref<1x8x64xf32, #tpu.memory_space<vmem>>, vector<1x8x64xf32>,
    return
  }
  func.func @transform_0(%arg0: i32) -> (i32, i32, i32) {
    %c0_i32 = arith.constant 0 : i32
    %c0_i32_0 = arith.constant 0 : i32
    %c0_i32_1 = arith.constant 0 : i32
    return %arg0, %c0_i32, %c0_i32_0 : i32, i32, i32
  }
  func.func @transform_1(%arg0: i32) -> (i32, i32) {
    %c0_i32 = arith.constant 0 : i32
    %c0_i32_0 = arith.constant 0 : i32
    %c0_i32_1 = arith.constant 0 : i32
    return %c0_i32, %c0_i32_0 : i32, i32
  }
  func.func @transform_2(%arg0: i32) -> (i32, i32) {
    %c0_i32 = arith.constant 0 : i32
    %c0_i32_0 = arith.constant 0 : i32
    %c0_i32_1 = arith.constant 0 : i32
    return %c0_i32, %c0_i32_0 : i32, i32
  }
  func.func @transform_3(%arg0: i32) -> (i32, i32, i32) {
    %c0_i32 = arith.constant 0 : i32
    %c0_i32_0 = arith.constant 0 : i32
    %c0_i32_1 = arith.constant 0 : i32
    return %arg0, %c0_i32, %c0_i32_0 : i32, i32, i32
  }
}

</mosaic_0001>

<llo_original>
// kernel: conv_block2_forward.3
$region0: #{conv_block2_forward.3}
  #allocation0 [shape = 'u32[]', space=smem, size = 0x4, offset = 0x4, fixed_abs, tag = 'smem constant byte address 0x4 - core index']
  #allocation1 [shape = 'u32[144,128]{1,0:T(1,128)}', space=vmem, size = 0x12000, scoped, tag = 'internal scratch']
  %s0 = inlined_call_operand.vmem [shape: f32[2,8,128], index: 0, kind: input, shape index: {}]
  %s1 = inlined_call_operand.vmem [shape: f32[128,128], index: 1, kind: input, shape index: {}]
  %s2 = inlined_call_operand.vmem [shape: f32[128,128], index: 2, kind: input, shape index: {}]
  %s3 = inlined_call_operand.vmem [shape: f32[2,8,128], index: 3, kind: output, shape index: {0}]
  %s4 = inlined_call_operand.vmem [shape: f32[2,2,128], index: 4, kind: output, shape index: {1}]
  %5 = xla_tuple %s3, %s4
  %s6 = sld [smem:[#allocation0]]
  $region53: #{conv_block2_forward.3} parent=0
    _
  %s8 = ssub.s32 1, %s6
  %s9 = scalar_select 0, %s8, %s6
  loop: start=0, step=1, limit=4
  $region2: #{conv_block2_forward.3} parent=0 // loop_pre_header
    _
  $region3: #{conv_block2_forward.3} parent=0 // loop_header
    %s11 = sphi 0, %s15
    %p12 = scmp.ge.s32.totalorder %s11, 4
    %s21 = sphi 0, %s23
    %s24 = sphi 0, %s21
    %s25 = sphi 0, %s24
    %s41 = sphi 0, %s25
    %s45 = sphi 0, %s45
    %s47 = sphi 0, %s45
    %s48 = sphi 0, %s47
    %s62 = sphi 0, %s48
    %s66 = sphi 0, %s66
    %s68 = sphi 0, %s66
    %s69 = sphi 0, %s68
    %s83 = sphi 0, %s69
    %s89 = sphi 0, %s91
    %s92 = sphi 0, %s89
    %s93 = sphi 0, %s92
    %s109 = sphi 0, %s93
    %s115 = sphi 0, %s117
    %s118 = sphi 0, %s115
    %s119 = sphi 0, %s118
    %s135 = sphi 0, %s119
  $region4: #{conv_block2_forward.3} parent=0 // loop_header_branch
    %14 = sbr.rel (%p12) target = $region8
  $region5: #{conv_block2_forward.3} parent=0 // loop_body
    %s16 = ssub.s32 %s11, 1
    %s17 = ssub.s32 %s11, 2
    %s18 = sadd.s32 %s11, 1
    %s19 = ssub.s32 %s11, %s18
    %p20 = scmp.eq.s32.totalorder %s19, 0
    %s22 = sadd.s32 %s21, 1
    %s23 = scalar_select %p20, %s21, %s22
    %p26 = pneg %p20
    %p27 = scmp.eq.s32.totalorder %s11, 1
    %p28 = por %p26, %p27
    %p29 = scmp.ne.s32.totalorder %s21, %s24
    %p30 = scmp.eq.s32.totalorder %s11, 0
    %p31 = por %p29, %p30
    %p32 = scmp.ne.s32.totalorder %s21, %s24
    %p33 = scmp.eq.s32.totalorder %s16, 1
    %p34 = por %p32, %p33
    %p35 = scmp.ne.s32.totalorder %s24, %s25
    %p36 = scmp.eq.s32.totalorder %s16, 0
    %p37 = por %p35, %p36
    %p38 = scmp.ne.s32.totalorder %s24, %s25
    %p39 = scmp.eq.s32.totalorder %s17, 1
    %p40 = por %p38, %p39
    %p42 = scmp.ne.s32.totalorder %s25, %s41
    %p43 = scmp.eq.s32.totalorder %s17, 0
    %p44 = por %p42, %p43
    %s46 = sadd.s32 %s45, 1
    %p49 = scmp.eq.s32.totalorder %s11, 1
    %p50 = scmp.ne.s32.totalorder %s45, %s47
    %p51 = scmp.eq.s32.totalorder %s11, 0
    %p52 = por %p50, %p51
    %p53 = scmp.ne.s32.totalorder %s45, %s47
    %p54 = scmp.eq.s32.totalorder %s16, 1
    %p55 = por %p53, %p54
    %p56 = scmp.ne.s32.totalorder %s47, %s48
    %p57 = scmp.eq.s32.totalorder %s16, 0
    %p58 = por %p56, %p57
    %p59 = scmp.ne.s32.totalorder %s47, %s48
    %p60 = scmp.eq.s32.totalorder %s17, 1
    %p61 = por %p59, %p60
    %p63 = scmp.ne.s32.totalorder %s48, %s62
    %p64 = scmp.eq.s32.totalorder %s17, 0
    %p65 = por %p63, %p64
    %s67 = sadd.s32 %s66, 1
    %p70 = scmp.eq.s32.totalorder %s11, 1
    %p71 = scmp.ne.s32.totalorder %s66, %s68
    %p72 = scmp.eq.s32.totalorder %s11, 0
    %p73 = por %p71, %p72
    %p74 = scmp.ne.s32.totalorder %s66, %s68
    %p75 = scmp.eq.s32.totalorder %s16, 1
    %p76 = por %p74, %p75
    %p77 = scmp.ne.s32.totalorder %s68, %s69
    %p78 = scmp.eq.s32.totalorder %s16, 0
    %p79 = por %p77, %p78
    %p80 = scmp.ne.s32.totalorder %s68, %s69
    %p81 = scmp.eq.s32.totalorder %s17, 1
    %p82 = por %p80, %p81
    %p84 = scmp.ne.s32.totalorder %s69, %s83
    %p85 = scmp.eq.s32.totalorder %s17, 0
    %p86 = por %p84, %p85
    %s87 = ssub.s32 %s11, %s18
    %p88 = scmp.eq.s32.totalorder %s87, 0
    %s90 = sadd.s32 %s89, 1
    %s91 = scalar_select %p88, %s89, %s90
    %p94 = pneg %p88
    %p95 = scmp.eq.s32.totalorder %s11, 1
    %p96 = por %p94, %p95
    %p97 = scmp.ne.s32.totalorder %s89, %s92
    %p98 = scmp.eq.s32.totalorder %s11, 0
    %p99 = por %p97, %p98
    %p100 = scmp.ne.s32.totalorder %s89, %s92
    %p101 = scmp.eq.s32.totalorder %s16, 1
    %p102 = por %p100, %p101
    %p103 = scmp.ne.s32.totalorder %s92, %s93
    %p104 = scmp.eq.s32.totalorder %s16, 0
    %p105 = por %p103, %p104
    %p106 = scmp.ne.s32.totalorder %s92, %s93
    %p107 = scmp.eq.s32.totalorder %s17, 1
    %p108 = por %p106, %p107
    %p110 = scmp.ne.s32.totalorder %s93, %s109
    %p111 = scmp.eq.s32.totalorder %s17, 0
    %p112 = por %p110, %p111
    %s113 = ssub.s32 %s11, %s18
    %p114 = scmp.eq.s32.totalorder %s113, 0
    %s116 = sadd.s32 %s115, 1
    %s117 = scalar_select %p114, %s115, %s116
    %p120 = pneg %p114
    %p121 = scmp.eq.s32.totalorder %s11, 1
    %p122 = por %p120, %p121
    %p123 = scmp.ne.s32.totalorder %s115, %s118
    %p124 = scmp.eq.s32.totalorder %s11, 0
    %p125 = por %p123, %p124
    %p126 = scmp.ne.s32.totalorder %s115, %s118
    %p127 = scmp.eq.s32.totalorder %s16, 1
    %p128 = por %p126, %p127
    %p129 = scmp.ne.s32.totalorder %s118, %s119
    %p130 = scmp.eq.s32.totalorder %s16, 0
    %p131 = por %p129, %p130
    %p132 = scmp.ne.s32.totalorder %s118, %s119
    %p133 = scmp.eq.s32.totalorder %s17, 1
    %p134 = por %p132, %p133
    %p136 = scmp.ne.s32.totalorder %s119, %s135
    %p137 = scmp.eq.s32.totalorder %s17, 0
    %p138 = por %p136, %p137
    %p139 = scmp.le.s32.totalorder 1, %s11
    %p140 = scmp.lt.s32.totalorder %s11, 3
    %p141 = pnand %p139, %p140
    %p142 = pneg %p141
    // Predicated region
    $region9: #{conv_block2_forward.3} parent=5 // pred_check
      _
    $region10: #{conv_block2_forward.3} parent=5 // pred_check_branch
      %144 = sbr.rel (%p141) target = $region12
    $region11: #{conv_block2_forward.3} parent=5 // pred_region
      %s145 = ssub.s32 %s11, 1
      // Predicated region
      $region13: #{conv_block2_forward.3} parent=11 // pred_check
        %p146 = pneg %p58
      $region14: #{conv_block2_forward.3} parent=11 // pred_check_branch
        %148 = sbr.rel (%p146) target = $region16
      $region15: #{conv_block2_forward.3} parent=11 // pred_region
        _
      $region16: #{conv_block2_forward.3} parent=11 // pred_fallthru
        _
      // Predicated region
      $region17: #{conv_block2_forward.3} parent=11 // pred_check
        %p149 = pneg %p79
      $region18: #{conv_block2_forward.3} parent=11 // pred_check_branch
        %151 = sbr.rel (%p149) target = $region20
      $region19: #{conv_block2_forward.3} parent=11 // pred_region
        _
      $region20: #{conv_block2_forward.3} parent=11 // pred_fallthru
        _
    $region12: #{conv_block2_forward.3} parent=5 // pred_fallthru
      _
    %p152 = scmp.lt.s32.totalorder %s11, 2
    // Predicated region
    $region21: #{conv_block2_forward.3} parent=5 // pred_check
      %p153 = pneg %p152
    $region22: #{conv_block2_forward.3} parent=5 // pred_check_branch
      %155 = sbr.rel (%p153) target = $region24
    $region23: #{conv_block2_forward.3} parent=5 // pred_region
      // Predicated region
      $region25: #{conv_block2_forward.3} parent=23 // pred_check
        %p156 = pneg %p31
      $region26: #{conv_block2_forward.3} parent=23 // pred_check_branch
        %158 = sbr.rel (%p156) target = $region28
      $region27: #{conv_block2_forward.3} parent=23 // pred_region
        %p159 = scmp.lt.s32.totalorder %s11, 1
        %s160 = scalar_select %p159, %s11, 1
        %s161 = smul.addr %s160, 8
        %s162 = scalar_lea.vmem %s0, %s161
      $region28: #{conv_block2_forward.3} parent=23 // pred_fallthru
        _
    $region24: #{conv_block2_forward.3} parent=5 // pred_fallthru
      _
    %p163 = scmp.le.s32.totalorder 1, %s11
    %p164 = scmp.lt.s32.totalorder %s11, 3
    %p165 = pnand %p163, %p164
    %p166 = pneg %p165
    // Predicated region
    $region29: #{conv_block2_forward.3} parent=5 // pred_check
      _
    $region30: #{conv_block2_forward.3} parent=5 // pred_check_branch
      %168 = sbr.rel (%p165) target = $region32
    $region31: #{conv_block2_forward.3} parent=5 // pred_region
      %s169 = ssub.s32 %s11, 1
      %p170 = scmp.lt.s32.totalorder %s16, 1
      %s171 = scalar_select %p170, %s16, 1
      %s172 = smul.addr %s171, 8
      %s173 = scalar_lea.vmem %s0, %s172
      %p174 = pneg %p37
      %p175 = pneg %p34
      %p176 = pneg %p58
      %p177 = pneg %p55
      %p178 = pneg %p79
      %p179 = pneg %p76
      %p180 = pneg %p105
      %p181 = pneg %p102
      %p182 = scmp.lt.s32.totalorder %s16, 1
      %s183 = scalar_select %p182, %s16, 1
      %s184 = smul.addr %s183, 8
      %s185 = scalar_lea.vmem %s3, %s184
      %p186 = pneg %p131
      %p187 = pneg %p128
      %p188 = scmp.lt.s32.totalorder %s16, 1
      %s189 = scalar_select %p188, %s16, 1
      %s190 = smul.addr %s189, 2
      %s191 = scalar_lea.vmem %s4, %s190
      %p192 = scmp.lt.s32.totalorder %s16, 1
      %s193 = scalar_select %p192, %s16, 1
      %s194 = smul.addr %s193, 8
      %s195 = scalar_lea.vmem %s0, %s194
      %p196 = scmp.lt.s32.totalorder %s16, 1
      %s197 = scalar_select %p196, %s16, 1
      %s198 = smul.addr %s197, 8
      %s199 = scalar_lea.vmem %s3, %s198
      %p200 = scmp.lt.s32.totalorder %s16, 1
      %s201 = scalar_select %p200, %s16, 1
      %s202 = smul.addr %s201, 2
      %s203 = scalar_lea.vmem %s4, %s202
      %v204 = vld [vmem:[%s195] sm:$0xff]
      %v206 = vrot.slane %v204, 7
      %vm208 = vcmask 1040384
      %v209 = vsel %vm208, 0.0, %v206
      %v210 = vld [vmem:[%s1] sm:$0xff]
      %v211 = vld [vmem:[%s1 + $0x8] sm:$0xff]
      %v212 = vld [vmem:[%s1 + $0x10] sm:$0xff]
      %v213 = vld [vmem:[%s1 + $0x18] sm:$0xff]
      %v214 = vld [vmem:[%s1 + $0x20] sm:$0xff]
      %v215 = vld [vmem:[%s1 + $0x28] sm:$0xff]
      %v216 = vld [vmem:[%s1 + $0x30] sm:$0xff]
      %v217 = vld [vmem:[%s1 + $0x38] sm:$0xff]
      %v218 = vld [vmem:[%s1 + $0x40] sm:$0xff]
      %v219 = vld [vmem:[%s1 + $0x48] sm:$0xff]
      %v220 = vld [vmem:[%s1 + $0x50] sm:$0xff]
      %v221 = vld [vmem:[%s1 + $0x58] sm:$0xff]
      %v222 = vld [vmem:[%s1 + $0x60] sm:$0xff]
      %v223 = vld [vmem:[%s1 + $0x68] sm:$0xff]
      %v224 = vld [vmem:[%s1 + $0x70] sm:$0xff]
      %v225 = vld [vmem:[%s1 + $0x78] sm:$0xff]
      %v226 = vld [vmem:[%s2] sm:$0xff]
      %v227 = vld [vmem:[%s2 + $0x8] sm:$0xff]
      %v228 = vld [vmem:[%s2 + $0x10] sm:$0xff]
      %v229 = vld [vmem:[%s2 + $0x18] sm:$0xff]
      %v230 = vld [vmem:[%s2 + $0x20] sm:$0xff]
      %v231 = vld [vmem:[%s2 + $0x28] sm:$0xff]
      %v232 = vld [vmem:[%s2 + $0x30] sm:$0xff]
      %v233 = vld [vmem:[%s2 + $0x38] sm:$0xff]
      %v234 = vld [vmem:[%s2 + $0x40] sm:$0xff]
      %v235 = vld [vmem:[%s2 + $0x48] sm:$0xff]
      %v236 = vld [vmem:[%s2 + $0x50] sm:$0xff]
      %v237 = vld [vmem:[%s2 + $0x58] sm:$0xff]
      %v238 = vld [vmem:[%s2 + $0x60] sm:$0xff]
      %v239 = vld [vmem:[%s2 + $0x68] sm:$0xff]
      %v240 = vld [vmem:[%s2 + $0x70] sm:$0xff]
      %v241 = vld [vmem:[%s2 + $0x78] sm:$0xff]
      %242 = vmatprep.subr.mxu0 0.0
      %243 = vmatpush1.msra.mxu0 %v226
      %244 = vmatprep.subr.mxu0 0.0
      %245 = vmatpush1.msra.mxu0 %v227
      %246 = vmatprep.subr.mxu0 0.0
      %247 = vmatpush1.msra.mxu0 %v228
      %248 = vmatprep.subr.mxu0 0.0
      %249 = vmatpush1.msra.mxu0 %v229
      %250 = vmatprep.subr.mxu0 0.0
      %251 = vmatpush1.msra.mxu0 %v230
      %252 = vmatprep.subr.mxu0 0.0
      %253 = vmatpush1.msra.mxu0 %v231
      %254 = vmatprep.subr.mxu0 0.0
      %255 = vmatpush1.msra.mxu0 %v232
      %256 = vmatprep.subr.mxu0 0.0
      %257 = vmatpush1.msra.mxu0 %v233
      %258 = vmatprep.subr.mxu0 0.0
      %259 = vmatpush1.msra.mxu0 %v234
      %260 = vmatprep.subr.mxu0 0.0
      %261 = vmatpush1.msra.mxu0 %v235
      %262 = vmatprep.subr.mxu0 0.0
      %263 = vmatpush1.msra.mxu0 %v236
      %264 = vmatprep.subr.mxu0 0.0
      %265 = vmatpush1.msra.mxu0 %v237
      %266 = vmatprep.subr.mxu0 0.0
      %267 = vmatpush1.msra.mxu0 %v238
      %268 = vmatprep.subr.mxu0 0.0
      %269 = vmatpush1.msra.mxu0 %v239
      %270 = vmatprep.subr.mxu0 0.0
      %271 = vmatpush1.msra.mxu0 %v240
      %272 = vmatprep.subr.mxu0 0.0
      %273 = vmatpush1.msra.mxu0 %v241
      %274 = vmatprep.subr.mxu0 0.0
      %275 = vmatpush1.msra.mxu0 0.0
      %276 = vmatprep.subr.mxu0 0.0
      %277 = vmatpush1.msra.mxu0 0.0
      %278 = vmatprep.subr.mxu0 0.0
      %279 = vmatpush1.msra.mxu0 0.0
      %280 = vmatprep.subr.mxu0 0.0
      %281 = vmatpush1.msra.mxu0 0.0
      %282 = vmatprep.subr.mxu0 0.0
      %283 = vmatpush1.msra.mxu0 0.0
      %284 = vmatprep.subr.mxu0 0.0
      %285 = vmatpush1.msra.mxu0 0.0
      %286 = vmatprep.subr.mxu0 0.0
      %287 = vmatpush1.msra.mxu0 0.0
      %288 = vmatprep.subr.mxu0 0.0
      %289 = vmatpush1.msra.mxu0 0.0
      %290 = vmatprep.subr.mxu0 0.0
      %291 = vmatpush1.msra.mxu0 0.0
      %292 = vmatprep.subr.mxu0 0.0
      %293 = vmatpush1.msra.mxu0 0.0
      %294 = vmatprep.subr.mxu0 0.0
      %295 = vmatpush1.msra.mxu0 0.0
      %296 = vmatprep.subr.mxu0 0.0
      %297 = vmatpush1.msra.mxu0 0.0
      %298 = vmatprep.subr.mxu0 0.0
      %299 = vmatpush1.msra.mxu0 0.0
      %300 = vmatprep.subr.mxu0 0.0
      %301 = vmatpush1.msra.mxu0 0.0
      %302 = vmatprep.subr.mxu0 0.0
      %303 = vmatpush1.msra.mxu0 0.0
      %304 = vmatprep.subr.mxu0 0.0
      %305 = vmatpush1.msra.mxu0 0.0
      %306 = vmatprep.mubr.f32.mxu0 0.0
      %307 = vmatmul.mubr.f32.gmra.mrb[0].mxu0 %v209
      %v308 = vpop.f32.mrb[0].mxu0
      %v309 = vadd.f32 0.0, %v308
      %v310 = vpop.f32.mrb[0].mxu0
      %311 = vdwg.mxu0
      %312 = vmatprep.subr.mxu0 0.0
      %313 = vmatpush1.msra.mxu0 %v210
      %314 = vmatprep.subr.mxu0 0.0
      %315 = vmatpush1.msra.mxu0 %v211
      %316 = vmatprep.subr.mxu0 0.0
      %317 = vmatpush1.msra.mxu0 %v212
      %318 = vmatprep.subr.mxu0 0.0
      %319 = vmatpush1.msra.mxu0 %v213
      %320 = vmatprep.subr.mxu0 0.0
      %321 = vmatpush1.msra.mxu0 %v214
      %322 = vmatprep.subr.mxu0 0.0
      %323 = vmatpush1.msra.mxu0 %v215
      %324 = vmatprep.subr.mxu0 0.0
      %325 = vmatpush1.msra.mxu0 %v216
      %326 = vmatprep.subr.mxu0 0.0
      %327 = vmatpush1.msra.mxu0 %v217
      %328 = vmatprep.subr.mxu0 0.0
      %329 = vmatpush1.msra.mxu0 %v218
      %330 = vmatprep.subr.mxu0 0.0
      %331 = vmatpush1.msra.mxu0 %v219
      %332 = vmatprep.subr.mxu0 0.0
      %333 = vmatpush1.msra.mxu0 %v220
      %334 = vmatprep.subr.mxu0 0.0
      %335 = vmatpush1.msra.mxu0 %v221
      %336 = vmatprep.subr.mxu0 0.0
      %337 = vmatpush1.msra.mxu0 %v222
      %338 = vmatprep.subr.mxu0 0.0
      %339 = vmatpush1.msra.mxu0 %v223
      %340 = vmatprep.subr.mxu0 0.0
      %341 = vmatpush1.msra.mxu0 %v224
      %342 = vmatprep.subr.mxu0 0.0
      %343 = vmatpush1.msra.mxu0 %v225
      %344 = vmatprep.subr.mxu0 0.0
      %345 = vmatpush1.msra.mxu0 0.0
      %346 = vmatprep.subr.mxu0 0.0
      %347 = vmatpush1.msra.mxu0 0.0
      %348 = vmatprep.subr.mxu0 0.0
      %349 = vmatpush1.msra.mxu0 0.0
      %350 = vmatprep.subr.mxu0 0.0
      %351 = vmatpush1.msra.mxu0 0.0
      %352 = vmatprep.subr.mxu0 0.0
      %353 = vmatpush1.msra.mxu0 0.0
      %354 = vmatprep.subr.mxu0 0.0
      %355 = vmatpush1.msra.mxu0 0.0
      %356 = vmatprep.subr.mxu0 0.0
      %357 = vmatpush1.msra.mxu0 0.0
      %358 = vmatprep.subr.mxu0 0.0
      %359 = vmatpush1.msra.mxu0 0.0
      %360 = vmatprep.subr.mxu0 0.0
      %361 = vmatpush1.msra.mxu0 0.0
      %362 = vmatprep.subr.mxu0 0.0
      %363 = vmatpush1.msra.mxu0 0.0
      %364 = vmatprep.subr.mxu0 0.0
      %365 = vmatpush1.msra.mxu0 0.0
      %366 = vmatprep.subr.mxu0 0.0
      %367 = vmatpush1.msra.mxu0 0.0
      %368 = vmatprep.subr.mxu0 0.0
      %369 = vmatpush1.msra.mxu0 0.0
      %370 = vmatprep.subr.mxu0 0.0
      %371 = vmatpush1.msra.mxu0 0.0
      %372 = vmatprep.subr.mxu0 0.0
      %373 = vmatpush1.msra.mxu0 0.0
      %374 = vmatprep.subr.mxu0 0.0
      %375 = vmatpush1.msra.mxu0 0.0
      %376 = vmatprep.mubr.f32.mxu0 0.0
      %377 = vmatmul.mubr.f32.gmra.mrb[0].mxu0 %v204
      %v378 = vpop.f32.mrb[0].mxu0
      %v379 = vadd.f32 %v309, %v378
      %v380 = vpop.f32.mrb[0].mxu0
      %381 = vdwg.mxu0
      %382 = vst [vmem:[%s199] sm:$0xff] %v379
      %v383 = vrot.slane %v379, 4
      %v384 = vadd.f32 %v379, %v383
      %v385 = vrot.slane %v384, 2
      %v386 = vadd.f32 %v384, %v385
      %v387 = vrot.slane %v386, 1
      %v388 = vadd.f32 %v386, %v387
      %v389 = vmul.f32 %v379, %v379
      %v390 = vrot.slane %v389, 4
      %v391 = vadd.f32 %v389, %v390
      %v392 = vrot.slane %v391, 2
      %v393 = vadd.f32 %v391, %v392
      %v394 = vrot.slane %v393, 1
      %v395 = vadd.f32 %v393, %v394
      %v396 = vsel %vm208, %v388, %v395
      %397 = vst [vmem:[%s203] sm:$0x3] %v396
      %p398 = scmp.lt.s32.totalorder %s16, 1
      %s399 = scalar_select %p398, %s16, 1
      %s400 = smul.addr %s399, 8
      %s401 = scalar_lea.vmem %s3, %s400
      %p402 = scmp.lt.s32.totalorder %s16, 1
      %s403 = scalar_select %p402, %s16, 1
      %s404 = smul.addr %s403, 2
      %s405 = scalar_lea.vmem %s4, %s404
      // Predicated region
      $region33: #{conv_block2_forward.3} parent=31 // pred_check
        %p406 = pneg %p102
      $region34: #{conv_block2_forward.3} parent=31 // pred_check_branch
        %408 = sbr.rel (%p406) target = $region36
      $region35: #{conv_block2_forward.3} parent=31 // pred_region
        _
      $region36: #{conv_block2_forward.3} parent=31 // pred_fallthru
        _
      // Predicated region
      $region37: #{conv_block2_forward.3} parent=31 // pred_check
        %p409 = pneg %p128
      $region38: #{conv_block2_forward.3} parent=31 // pred_check_branch
        %411 = sbr.rel (%p409) target = $region40
      $region39: #{conv_block2_forward.3} parent=31 // pred_region
        _
      $region40: #{conv_block2_forward.3} parent=31 // pred_fallthru
        _
    $region32: #{conv_block2_forward.3} parent=5 // pred_fallthru
      _
    %p412 = scmp.le.s32.totalorder 2, %s11
    // Predicated region
    $region41: #{conv_block2_forward.3} parent=5 // pred_check
      %p413 = pneg %p412
    $region42: #{conv_block2_forward.3} parent=5 // pred_check_branch
      %415 = sbr.rel (%p413) target = $region44
    $region43: #{conv_block2_forward.3} parent=5 // pred_region
      %s416 = ssub.s32 %s11, 2
      // Predicated region
      $region45: #{conv_block2_forward.3} parent=43 // pred_check
        %p417 = pneg %p108
      $region46: #{conv_block2_forward.3} parent=43 // pred_check_branch
        %419 = sbr.rel (%p417) target = $region48
      $region47: #{conv_block2_forward.3} parent=43 // pred_region
        %p420 = scmp.lt.s32.totalorder %s17, 1
        %s421 = scalar_select %p420, %s17, 1
        %s422 = smul.addr %s421, 8
        %s423 = scalar_lea.vmem %s3, %s422
      $region48: #{conv_block2_forward.3} parent=43 // pred_fallthru
        _
      // Predicated region
      $region49: #{conv_block2_forward.3} parent=43 // pred_check
        %p424 = pneg %p134
      $region50: #{conv_block2_forward.3} parent=43 // pred_check_branch
        %426 = sbr.rel (%p424) target = $region52
      $region51: #{conv_block2_forward.3} parent=43 // pred_region
        %p427 = scmp.lt.s32.totalorder %s17, 1
        %s428 = scalar_select %p427, %s17, 1
        %s429 = smul.addr %s428, 2
        %s430 = scalar_lea.vmem %s4, %s429
      $region52: #{conv_block2_forward.3} parent=43 // pred_fallthru
        _
    $region44: #{conv_block2_forward.3} parent=5 // pred_fallthru
      _
  $region6: #{conv_block2_forward.3} parent=0 // loop_footer
    %s15 = sadd.s32 1, %s11
  $region7: #{conv_block2_forward.3} parent=0 // loop_footer_branch
    %10 = sbr.rel target = $region3
  $region8: #{conv_block2_forward.3} parent=0 // loop_exit
    _

// kernel: squeeze.23
$region0: #{squeeze.23}
  %s0 = inlined_call_operand.vmem [shape: f32[128], index: 0, kind: input, shape index: {}]
  %s1 = inlined_call_operand.vmem [shape: f32[2,8,8], index: 1, kind: output, shape index: {}]
  $region1: #{squeeze.23} parent=0
    #allocation0 [shape = 'u8[4096]{0}', space=vmem, size = 0x1000, scoped, tag = 'scoped mem for input reshape']
    %s3 = sshllo.u32 0, 1
    %v4 = vld [vmem:[%s0] sm:%s3]
    %5 = vst [vmem:[#allocation0] sm:%s3] %v4
    %v6 = vld [vmem:[#allocation0] sm:$0x1]
    %vm7 = vcmask 64512
    %8 = vst.msk [vmem:[%s1] sm:$0x1] %vm7, %v6
    %v9 = vld [vmem:[#allocation0] sm:$0x1]
    %10 = vrot.lane.b32.xlu0 %v9, 120
    %v11 = vpop.permute.xlu0 %10
    %vm12 = vcmask 64512
    %s13 = scalar_lea.vmem %s1, 1
    %14 = vst.msk [vmem:[%s13] sm:$0x1] %vm12, %v11
    %v15 = vld [vmem:[#allocation0] sm:$0x1]
    %16 = vrot.lane.b32.xlu0 %v15, 112
    %v17 = vpop.permute.xlu0 %16
    %vm18 = vcmask 64512
    %s19 = scalar_lea.vmem %s1, 2
    %20 = vst.msk [vmem:[%s19] sm:$0x1] %vm18, %v17
    %v21 = vld [vmem:[#allocation0] sm:$0x1]
    %22 = vrot.lane.b32.xlu0 %v21, 104
    %v23 = vpop.permute.xlu0 %22
    %vm24 = vcmask 64512
    %s25 = scalar_lea.vmem %s1, 3
    %26 = vst.msk [vmem:[%s25] sm:$0x1] %vm24, %v23
    %v27 = vld [vmem:[#allocation0] sm:$0x1]
    %28 = vrot.lane.b32.xlu0 %v27, 96
    %v29 = vpop.permute.xlu0 %28
    %vm30 = vcmask 64512
    %s31 = scalar_lea.vmem %s1, 4
    %32 = vst.msk [vmem:[%s31] sm:$0x1] %vm30, %v29
    %v33 = vld [vmem:[#allocation0] sm:$0x1]
    %34 = vrot.lane.b32.xlu0 %v33, 88
    %v35 = vpop.permute.xlu0 %34
    %vm36 = vcmask 64512
    %s37 = scalar_lea.vmem %s1, 5
    %38 = vst.msk [vmem:[%s37] sm:$0x1] %vm36, %v35
    %v39 = vld [vmem:[#allocation0] sm:$0x1]
    %40 = vrot.lane.b32.xlu0 %v39, 80
    %v41 = vpop.permute.xlu0 %40
    %vm42 = vcmask 64512
    %s43 = scalar_lea.vmem %s1, 6
    %44 = vst.msk [vmem:[%s43] sm:$0x1] %vm42, %v41
    %v45 = vld [vmem:[#allocation0] sm:$0x1]
    %46 = vrot.lane.b32.xlu0 %v45, 72
    %v47 = vpop.permute.xlu0 %46
    %vm48 = vcmask 64512
    %s49 = scalar_lea.vmem %s1, 7
    %50 = vst.msk [vmem:[%s49] sm:$0x1] %vm48, %v47
    %v51 = vld [vmem:[#allocation0] sm:$0x1]
    %52 = vrot.lane.b32.xlu0 %v51, 64
    %v53 = vpop.permute.xlu0 %52
    %vm54 = vcmask 64512
    %s55 = scalar_lea.vmem %s1, 8
    %56 = vst.msk [vmem:[%s55] sm:$0x1] %vm54, %v53
    %v57 = vld [vmem:[#allocation0] sm:$0x1]
    %58 = vrot.lane.b32.xlu0 %v57, 56
    %v59 = vpop.permute.xlu0 %58
    %vm60 = vcmask 64512
    %s61 = scalar_lea.vmem %s1, 9
    %62 = vst.msk [vmem:[%s61] sm:$0x1] %vm60, %v59
    %v63 = vld [vmem:[#allocation0] sm:$0x1]
    %64 = vrot.lane.b32.xlu0 %v63, 48
    %v65 = vpop.permute.xlu0 %64
    %vm66 = vcmask 64512
    %s67 = scalar_lea.vmem %s1, 10
    %68 = vst.msk [vmem:[%s67] sm:$0x1] %vm66, %v65
    %v69 = vld [vmem:[#allocation0] sm:$0x1]
    %70 = vrot.lane.b32.xlu0 %v69, 40
    %v71 = vpop.permute.xlu0 %70
    %vm72 = vcmask 64512
    %s73 = scalar_lea.vmem %s1, 11
    %74 = vst.msk [vmem:[%s73] sm:$0x1] %vm72, %v71
    %v75 = vld [vmem:[#allocation0] sm:$0x1]
    %76 = vrot.lane.b32.xlu0 %v75, 32
    %v77 = vpop.permute.xlu0 %76
    %vm78 = vcmask 64512
    %s79 = scalar_lea.vmem %s1, 12
    %80 = vst.msk [vmem:[%s79] sm:$0x1] %vm78, %v77
    %v81 = vld [vmem:[#allocation0] sm:$0x1]
    %82 = vrot.lane.b32.xlu0 %v81, 24
    %v83 = vpop.permute.xlu0 %82
    %vm84 = vcmask 64512
    %s85 = scalar_lea.vmem %s1, 13
    %86 = vst.msk [vmem:[%s85] sm:$0x1] %vm84, %v83
    %v87 = vld [vmem:[#allocation0] sm:$0x1]
    %88 = vrot.lane.b32.xlu0 %v87, 16
    %v89 = vpop.permute.xlu0 %88
    %vm90 = vcmask 64512
    %s91 = scalar_lea.vmem %s1, 14
    %92 = vst.msk [vmem:[%s91] sm:$0x1] %vm90, %v89
    %v93 = vld [vmem:[#allocation0] sm:$0x1]
    %94 = vrot.lane.b32.xlu0 %v93, 8
    %v95 = vpop.permute.xlu0 %94
    %vm96 = vcmask 64512
    %s97 = scalar_lea.vmem %s1, 15
    %98 = vst.msk [vmem:[%s97] sm:$0x1] %vm96, %v95

// kernel: tile.38
$region0: #{tile.38}
  #allocation0 [shape = 's32[1]{0}', space=sflag, size = 0x4, scoped, tag = 'scoped memory for tile.38']
  %s0 = inlined_call_operand.vmem [shape: f32[8], index: 0, kind: input, shape index: {}]
  %s1 = inlined_call_operand.vmem [shape: f32[8,8], index: 1, kind: output, shape index: {}]
  // Predicated region
  $region2: #{tile.38} parent=0 // pred_check
    _
  $region3: #{tile.38} parent=0 // pred_check_branch
    %3 = sbr.rel (0) target = $region5
  $region4: #{tile.38} parent=0 // pred_region
    _
  $region5: #{tile.38} parent=0 // pred_fallthru
    _
  %v4 = vld [vmem:[%s0] ss:$0 sm:$0xff]
  %5 = vst [vmem:[%s1] sm:$0xff] %v4

// kernel: tile.39
$region0: #{tile.39}
  %s0 = inlined_call_operand.vmem [shape: f32[8,8], index: 0, kind: input, shape index: {}]
  %s1 = inlined_call_operand.vmem [shape: f32[64], index: 1, kind: output, shape index: {}]
  $region1: #{tile.39} parent=0
    #allocation0 [shape = 'u8[4096]{0}', space=vmem, size = 0x1000, scoped, tag = 'scoped mem for output reshape']
    %v2 = vld [vmem:[%s0] sm:$0x1]
    %vm3 = vcmask 64512
    %4 = vst.msk [vmem:[#allocation0] sm:$0x1] %vm3, %v2
    %s5 = scalar_lea.vmem %s0, 7
    %v6 = vld [vmem:[%s5] sm:$0x1]
    %7 = vrot.lane.b32.xlu0 %v6, 56
    %v8 = vpop.permute.xlu0 %7
    %vm9 = vcmask 523712
    %10 = vst.msk [vmem:[#allocation0] sm:$0x1] %vm9, %v8
    %s11 = scalar_lea.vmem %s0, 6
    %v12 = vld [vmem:[%s11] sm:$0x1]
    %13 = vrot.lane.b32.xlu0 %v12, 48
    %v14 = vpop.permute.xlu0 %13
    %vm15 = vcmask 458112
    %16 = vst.msk [vmem:[#allocation0] sm:$0x1] %vm15, %v14
    %s17 = scalar_lea.vmem %s0, 5
    %v18 = vld [vmem:[%s17] sm:$0x1]
    %19 = vrot.lane.b32.xlu0 %v18, 40
    %v20 = vpop.permute.xlu0 %19
    %vm21 = vcmask 392512
    %22 = vst.msk [vmem:[#allocation0] sm:$0x1] %vm21, %v20
    %s23 = scalar_lea.vmem %s0, 4
    %v24 = vld [vmem:[%s23] sm:$0x1]
    %25 = vrot.lane.b32.xlu0 %v24, 32
    %v26 = vpop.permute.xlu0 %25
    %vm27 = vcmask 326912
    %28 = vst.msk [vmem:[#allocation0] sm:$0x1] %vm27, %v26
    %s29 = scalar_lea.vmem %s0, 3
    %v30 = vld [vmem:[%s29] sm:$0x1]
    %31 = vrot.lane.b32.xlu0 %v30, 24
    %v32 = vpop.permute.xlu0 %31
    %vm33 = vcmask 261312
    %34 = vst.msk [vmem:[#allocation0] sm:$0x1] %vm33, %v32
    %s35 = scalar_lea.vmem %s0, 2
    %v36 = vld [vmem:[%s35] sm:$0x1]
    %37 = vrot.lane.b32.xlu0 %v36, 16
    %v38 = vpop.permute.xlu0 %37
    %vm39 = vcmask 195712
    %40 = vst.msk [vmem:[#allocation0] sm:$0x1] %vm39, %v38
    %s41 = scalar_lea.vmem %s0, 1
    %v42 = vld [vmem:[%s41] sm:$0x1]
    %43 = vrot.lane.b32.xlu0 %v42, 8
    %v44 = vpop.permute.xlu0 %43
    %vm45 = vcmask 130112
    %46 = vst.msk [vmem:[#allocation0] sm:$0x1] %vm45, %v44
    %s48 = sshllo.u32 0, 1
    %v50 = vld [vmem:[#allocation0] sm:%s48]
    %s51 = sshllo.u32 0, 1
    %52 = vst [vmem:[%s1] sm:%s51] %v50

// kernel: squeeze.32
$region0: #{squeeze.32}
  %s0 = inlined_call_operand.vmem [shape: f32[64], index: 0, kind: input, shape index: {}]
  %s1 = inlined_call_operand.vmem [shape: f32[8,8], index: 1, kind: output, shape index: {}]
  $region1: #{squeeze.32} parent=0
    #allocation0 [shape = 'u8[4096]{0}', space=vmem, size = 0x1000, scoped, tag = 'scoped mem for input reshape']
    %s3 = sshllo.u32 0, 1
    %v4 = vld [vmem:[%s0] sm:%s3]
    %5 = vst [vmem:[#allocation0] sm:%s3] %v4
    %v6 = vld [vmem:[#allocation0] sm:$0x1]
    %vm7 = vcmask 64512
    %8 = vst.msk [vmem:[%s1] sm:$0x1] %vm7, %v6
    %v9 = vld [vmem:[#allocation0] sm:$0x1]
    %10 = vrot.lane.b32.xlu0 %v9, 120
    %v11 = vpop.permute.xlu0 %10
    %vm12 = vcmask 64512
    %s13 = scalar_lea.vmem %s1, 1
    %14 = vst.msk [vmem:[%s13] sm:$0x1] %vm12, %v11
    %v15 = vld [vmem:[#allocation0] sm:$0x1]
    %16 = vrot.lane.b32.xlu0 %v15, 112
    %v17 = vpop.permute.xlu0 %16
    %vm18 = vcmask 64512
    %s19 = scalar_lea.vmem %s1, 2
    %20 = vst.msk [vmem:[%s19] sm:$0x1] %vm18, %v17
    %v21 = vld [vmem:[#allocation0] sm:$0x1]
    %22 = vrot.lane.b32.xlu0 %v21, 104
    %v23 = vpop.permute.xlu0 %22
    %vm24 = vcmask 64512
    %s25 = scalar_lea.vmem %s1, 3
    %26 = vst.msk [vmem:[%s25] sm:$0x1] %vm24, %v23
    %v27 = vld [vmem:[#allocation0] sm:$0x1]
    %28 = vrot.lane.b32.xlu0 %v27, 96
    %v29 = vpop.permute.xlu0 %28
    %vm30 = vcmask 64512
    %s31 = scalar_lea.vmem %s1, 4
    %32 = vst.msk [vmem:[%s31] sm:$0x1] %vm30, %v29
    %v33 = vld [vmem:[#allocation0] sm:$0x1]
    %34 = vrot.lane.b32.xlu0 %v33, 88
    %v35 = vpop.permute.xlu0 %34
    %vm36 = vcmask 64512
    %s37 = scalar_lea.vmem %s1, 5
    %38 = vst.msk [vmem:[%s37] sm:$0x1] %vm36, %v35
    %v39 = vld [vmem:[#allocation0] sm:$0x1]
    %40 = vrot.lane.b32.xlu0 %v39, 80
    %v41 = vpop.permute.xlu0 %40
    %vm42 = vcmask 64512
    %s43 = scalar_lea.vmem %s1, 6
    %44 = vst.msk [vmem:[%s43] sm:$0x1] %vm42, %v41
    %v45 = vld [vmem:[#allocation0] sm:$0x1]
    %46 = vrot.lane.b32.xlu0 %v45, 72
    %v47 = vpop.permute.xlu0 %46
    %vm48 = vcmask 64512
    %s49 = scalar_lea.vmem %s1, 7
    %50 = vst.msk [vmem:[%s49] sm:$0x1] %vm48, %v47

// kernel: conv_block2_forward.5
$region0: #{conv_block2_forward.5}
  #allocation0 [shape = 'u32[]', space=smem, size = 0x4, offset = 0x4, fixed_abs, tag = 'smem constant byte address 0x4 - core index']
  #allocation1 [shape = 'u32[144,128]{1,0:T(1,128)}', space=vmem, size = 0x12000, scoped, tag = 'internal scratch']
  %s0 = inlined_call_operand.vmem [shape: f32[2,8,128], index: 0, kind: input, shape index: {}]
  %s1 = inlined_call_operand.vmem [shape: f32[1,128], index: 1, kind: input, shape index: {}]
  %s2 = inlined_call_operand.vmem [shape: f32[1,128], index: 2, kind: input, shape index: {}]
  %s3 = inlined_call_operand.vmem [shape: f32[2,8,64], index: 3, kind: output, shape index: {}]
  %s4 = sld [smem:[#allocation0]]
  $region45: #{conv_block2_forward.5} parent=0
    _
  %s6 = ssub.s32 1, %s4
  %s7 = scalar_select 0, %s6, %s4
  loop: start=0, step=1, limit=4
  $region2: #{conv_block2_forward.5} parent=0 // loop_pre_header
    _
  $region3: #{conv_block2_forward.5} parent=0 // loop_header
    %s9 = sphi 0, %s13
    %p10 = scmp.ge.s32.totalorder %s9, 4
    %s19 = sphi 0, %s21
    %s22 = sphi 0, %s19
    %s23 = sphi 0, %s22
    %s39 = sphi 0, %s23
    %s43 = sphi 0, %s43
    %s45 = sphi 0, %s43
    %s46 = sphi 0, %s45
    %s60 = sphi 0, %s46
    %s64 = sphi 0, %s64
    %s66 = sphi 0, %s64
    %s67 = sphi 0, %s66
    %s81 = sphi 0, %s67
    %s87 = sphi 0, %s89
    %s90 = sphi 0, %s87
    %s91 = sphi 0, %s90
    %s107 = sphi 0, %s91
  $region4: #{conv_block2_forward.5} parent=0 // loop_header_branch
    %12 = sbr.rel (%p10) target = $region8
  $region5: #{conv_block2_forward.5} parent=0 // loop_body
    %s14 = ssub.s32 %s9, 1
    %s15 = ssub.s32 %s9, 2
    %s16 = sadd.s32 %s9, 1
    %s17 = ssub.s32 %s9, %s16
    %p18 = scmp.eq.s32.totalorder %s17, 0
    %s20 = sadd.s32 %s19, 1
    %s21 = scalar_select %p18, %s19, %s20
    %p24 = pneg %p18
    %p25 = scmp.eq.s32.totalorder %s9, 1
    %p26 = por %p24, %p25
    %p27 = scmp.ne.s32.totalorder %s19, %s22
    %p28 = scmp.eq.s32.totalorder %s9, 0
    %p29 = por %p27, %p28
    %p30 = scmp.ne.s32.totalorder %s19, %s22
    %p31 = scmp.eq.s32.totalorder %s14, 1
    %p32 = por %p30, %p31
    %p33 = scmp.ne.s32.totalorder %s22, %s23
    %p34 = scmp.eq.s32.totalorder %s14, 0
    %p35 = por %p33, %p34
    %p36 = scmp.ne.s32.totalorder %s22, %s23
    %p37 = scmp.eq.s32.totalorder %s15, 1
    %p38 = por %p36, %p37
    %p40 = scmp.ne.s32.totalorder %s23, %s39
    %p41 = scmp.eq.s32.totalorder %s15, 0
    %p42 = por %p40, %p41
    %s44 = sadd.s32 %s43, 1
    %p47 = scmp.eq.s32.totalorder %s9, 1
    %p48 = scmp.ne.s32.totalorder %s43, %s45
    %p49 = scmp.eq.s32.totalorder %s9, 0
    %p50 = por %p48, %p49
    %p51 = scmp.ne.s32.totalorder %s43, %s45
    %p52 = scmp.eq.s32.totalorder %s14, 1
    %p53 = por %p51, %p52
    %p54 = scmp.ne.s32.totalorder %s45, %s46
    %p55 = scmp.eq.s32.totalorder %s14, 0
    %p56 = por %p54, %p55
    %p57 = scmp.ne.s32.totalorder %s45, %s46
    %p58 = scmp.eq.s32.totalorder %s15, 1
    %p59 = por %p57, %p58
    %p61 = scmp.ne.s32.totalorder %s46, %s60
    %p62 = scmp.eq.s32.totalorder %s15, 0
    %p63 = por %p61, %p62
    %s65 = sadd.s32 %s64, 1
    %p68 = scmp.eq.s32.totalorder %s9, 1
    %p69 = scmp.ne.s32.totalorder %s64, %s66
    %p70 = scmp.eq.s32.totalorder %s9, 0
    %p71 = por %p69, %p70
    %p72 = scmp.ne.s32.totalorder %s64, %s66
    %p73 = scmp.eq.s32.totalorder %s14, 1
    %p74 = por %p72, %p73
    %p75 = scmp.ne.s32.totalorder %s66, %s67
    %p76 = scmp.eq.s32.totalorder %s14, 0
    %p77 = por %p75, %p76
    %p78 = scmp.ne.s32.totalorder %s66, %s67
    %p79 = scmp.eq.s32.totalorder %s15, 1
    %p80 = por %p78, %p79
    %p82 = scmp.ne.s32.totalorder %s67, %s81
    %p83 = scmp.eq.s32.totalorder %s15, 0
    %p84 = por %p82, %p83
    %s85 = ssub.s32 %s9, %s16
    %p86 = scmp.eq.s32.totalorder %s85, 0
    %s88 = sadd.s32 %s87, 1
    %s89 = scalar_select %p86, %s87, %s88
    %p92 = pneg %p86
    %p93 = scmp.eq.s32.totalorder %s9, 1
    %p94 = por %p92, %p93
    %p95 = scmp.ne.s32.totalorder %s87, %s90
    %p96 = scmp.eq.s32.totalorder %s9, 0
    %p97 = por %p95, %p96
    %p98 = scmp.ne.s32.totalorder %s87, %s90
    %p99 = scmp.eq.s32.totalorder %s14, 1
    %p100 = por %p98, %p99
    %p101 = scmp.ne.s32.totalorder %s90, %s91
    %p102 = scmp.eq.s32.totalorder %s14, 0
    %p103 = por %p101, %p102
    %p104 = scmp.ne.s32.totalorder %s90, %s91
    %p105 = scmp.eq.s32.totalorder %s15, 1
    %p106 = por %p104, %p105
    %p108 = scmp.ne.s32.totalorder %s91, %s107
    %p109 = scmp.eq.s32.totalorder %s15, 0
    %p110 = por %p108, %p109
    %p111 = scmp.le.s32.totalorder 1, %s9
    %p112 = scmp.lt.s32.totalorder %s9, 3
    %p113 = pnand %p111, %p112
    %p114 = pneg %p113
    // Predicated region
    $region9: #{conv_block2_forward.5} parent=5 // pred_check
      _
    $region10: #{conv_block2_forward.5} parent=5 // pred_check_branch
      %116 = sbr.rel (%p113) target = $region12
    $region11: #{conv_block2_forward.5} parent=5 // pred_region
      %s117 = ssub.s32 %s9, 1
      // Predicated region
      $region13: #{conv_block2_forward.5} parent=11 // pred_check
        %p118 = pneg %p56
      $region14: #{conv_block2_forward.5} parent=11 // pred_check_branch
        %120 = sbr.rel (%p118) target = $region16
      $region15: #{conv_block2_forward.5} parent=11 // pred_region
        _
      $region16: #{conv_block2_forward.5} parent=11 // pred_fallthru
        _
      // Predicated region
      $region17: #{conv_block2_forward.5} parent=11 // pred_check
        %p121 = pneg %p77
      $region18: #{conv_block2_forward.5} parent=11 // pred_check_branch
        %123 = sbr.rel (%p121) target = $region20
      $region19: #{conv_block2_forward.5} parent=11 // pred_region
        _
      $region20: #{conv_block2_forward.5} parent=11 // pred_fallthru
        _
    $region12: #{conv_block2_forward.5} parent=5 // pred_fallthru
      _
    %p124 = scmp.lt.s32.totalorder %s9, 2
    // Predicated region
    $region21: #{conv_block2_forward.5} parent=5 // pred_check
      %p125 = pneg %p124
    $region22: #{conv_block2_forward.5} parent=5 // pred_check_branch
      %127 = sbr.rel (%p125) target = $region24
    $region23: #{conv_block2_forward.5} parent=5 // pred_region
      // Predicated region
      $region25: #{conv_block2_forward.5} parent=23 // pred_check
        %p128 = pneg %p29
      $region26: #{conv_block2_forward.5} parent=23 // pred_check_branch
        %130 = sbr.rel (%p128) target = $region28
      $region27: #{conv_block2_forward.5} parent=23 // pred_region
        %p131 = scmp.lt.s32.totalorder %s9, 1
        %s132 = scalar_select %p131, %s9, 1
        %s133 = smul.addr %s132, 8
        %s134 = scalar_lea.vmem %s0, %s133
      $region28: #{conv_block2_forward.5} parent=23 // pred_fallthru
        _
    $region24: #{conv_block2_forward.5} parent=5 // pred_fallthru
      _
    %p135 = scmp.le.s32.totalorder 1, %s9
    %p136 = scmp.lt.s32.totalorder %s9, 3
    %p137 = pnand %p135, %p136
    %p138 = pneg %p137
    // Predicated region
    $region29: #{conv_block2_forward.5} parent=5 // pred_check
      _
    $region30: #{conv_block2_forward.5} parent=5 // pred_check_branch
      %140 = sbr.rel (%p137) target = $region32
    $region31: #{conv_block2_forward.5} parent=5 // pred_region
      %s141 = ssub.s32 %s9, 1
      %p142 = scmp.lt.s32.totalorder %s14, 1
      %s143 = scalar_select %p142, %s14, 1
      %s144 = smul.addr %s143, 8
      %s145 = scalar_lea.vmem %s0, %s144
      %p146 = pneg %p35
      %p147 = pneg %p32
      %p148 = pneg %p56
      %p149 = pneg %p53
      %p150 = pneg %p77
      %p151 = pneg %p74
      %p152 = pneg %p103
      %p153 = pneg %p100
      %p154 = scmp.lt.s32.totalorder %s14, 1
      %s155 = scalar_select %p154, %s14, 1
      %s156 = smul.addr %s155, 8
      %s157 = scalar_lea.vmem %s3, %s156
      %p158 = scmp.lt.s32.totalorder %s14, 1
      %s159 = scalar_select %p158, %s14, 1
      %s160 = smul.addr %s159, 8
      %s161 = scalar_lea.vmem %s0, %s160
      %p162 = scmp.lt.s32.totalorder %s14, 1
      %s163 = scalar_select %p162, %s14, 1
      %s164 = smul.addr %s163, 8
      %s165 = scalar_lea.vmem %s3, %s164
      %v166 = vld [vmem:[%s161] sm:$0xff]
      %v167 = vld [vmem:[%s1] sm:$0x1]
      %v169 = vlaneseq
      %v170 = vshrl.u32 %v169, 7
      %v171 = vsub.s32 0, %v170
      %v172 = vrot.slane %v167, %v171
      %v174 = vmul.f32 %v166, %v172
      %v175 = vld [vmem:[%s2] sm:$0x1]
      %v177 = vlaneseq
      %v178 = vshrl.u32 %v177, 7
      %v179 = vsub.s32 0, %v178
      %v180 = vrot.slane %v175, %v179
      %v182 = vadd.f32 %v174, %v180
      %vm183 = vcmp.gt.f32.partialorder %v182, 0.0
      %v184 = vmul.f32 %v182, 0.01
      %v185 = vsel %vm183, %v182, %v184
      %vm186 = vcmask 523264
      %187 = vst.msk [vmem:[%s165] sm:$0xff] %vm186, %v185
      %p188 = scmp.lt.s32.totalorder %s14, 1
      %s189 = scalar_select %p188, %s14, 1
      %s190 = smul.addr %s189, 8
      %s191 = scalar_lea.vmem %s3, %s190
      // Predicated region
      $region33: #{conv_block2_forward.5} parent=31 // pred_check
        %p192 = pneg %p100
      $region34: #{conv_block2_forward.5} parent=31 // pred_check_branch
        %194 = sbr.rel (%p192) target = $region36
      $region35: #{conv_block2_forward.5} parent=31 // pred_region
        _
      $region36: #{conv_block2_forward.5} parent=31 // pred_fallthru
        _
    $region32: #{conv_block2_forward.5} parent=5 // pred_fallthru
      _
    %p195 = scmp.le.s32.totalorder 2, %s9
    // Predicated region
    $region37: #{conv_block2_forward.5} parent=5 // pred_check
      %p196 = pneg %p195
    $region38: #{conv_block2_forward.5} parent=5 // pred_check_branch
      %198 = sbr.rel (%p196) target = $region40
    $region39: #{conv_block2_forward.5} parent=5 // pred_region
      %s199 = ssub.s32 %s9, 2
      // Predicated region
      $region41: #{conv_block2_forward.5} parent=39 // pred_check
        %p200 = pneg %p106
      $region42: #{conv_block2_forward.5} parent=39 // pred_check_branch
        %202 = sbr.rel (%p200) target = $region44
      $region43: #{conv_block2_forward.5} parent=39 // pred_region
        %p203 = scmp.lt.s32.totalorder %s15, 1
        %s204 = scalar_select %p203, %s15, 1
        %s205 = smul.addr %s204, 8
        %s206 = scalar_lea.vmem %s3, %s205
      $region44: #{conv_block2_forward.5} parent=39 // pred_fallthru
        _
    $region40: #{conv_block2_forward.5} parent=5 // pred_fallthru
      _
  $region6: #{conv_block2_forward.5} parent=0 // loop_footer
    %s13 = sadd.s32 1, %s9
  $region7: #{conv_block2_forward.5} parent=0 // loop_footer_branch
    %8 = sbr.rel target = $region3
  $region8: #{conv_block2_forward.5} parent=0 // loop_exit
    _

// kernel: conv_block2_forward.4
$region0: #{conv_block2_forward.4}
  #allocation0 [shape = 'u32[]', space=smem, size = 0x4, offset = 0x4, fixed_abs, tag = 'smem constant byte address 0x4 - core index']
  #allocation1 [shape = 'u32[144,128]{1,0:T(1,128)}', space=vmem, size = 0x12000, scoped, tag = 'internal scratch']
  %s0 = inlined_call_operand.vmem [shape: f32[2,8,128], index: 0, kind: input, shape index: {}]
  %s1 = inlined_call_operand.vmem [shape: f32[128,128], index: 1, kind: input, shape index: {}]
  %s2 = inlined_call_operand.vmem [shape: f32[128,128], index: 2, kind: input, shape index: {}]
  %s3 = inlined_call_operand.vmem [shape: f32[128,128], index: 3, kind: input, shape index: {}]
  %s4 = inlined_call_operand.vmem [shape: f32[1,128], index: 4, kind: input, shape index: {}]
  %s5 = inlined_call_operand.vmem [shape: f32[1,128], index: 5, kind: input, shape index: {}]
  %s6 = inlined_call_operand.vmem [shape: f32[1,128], index: 6, kind: input, shape index: {}]
  %s7 = inlined_call_operand.vmem [shape: f32[2,8,128], index: 7, kind: output, shape index: {0}]
  %s8 = inlined_call_operand.vmem [shape: f32[2,2,128], index: 8, kind: output, shape index: {1}]
  %9 = xla_tuple %s7, %s8
  %s10 = sld [smem:[#allocation0]]
  $region69: #{conv_block2_forward.4} parent=0
    _
  %s12 = ssub.s32 1, %s10
  %s13 = scalar_select 0, %s12, %s10
  loop: start=0, step=1, limit=4
  $region2: #{conv_block2_forward.4} parent=0 // loop_pre_header
    _
  $region3: #{conv_block2_forward.4} parent=0 // loop_header
    %s15 = sphi 0, %s19
    %p16 = scmp.ge.s32.totalorder %s15, 4
    %s25 = sphi 0, %s27
    %s28 = sphi 0, %s25
    %s29 = sphi 0, %s28
    %s45 = sphi 0, %s29
    %s49 = sphi 0, %s49
    %s51 = sphi 0, %s49
    %s52 = sphi 0, %s51
    %s66 = sphi 0, %s52
    %s70 = sphi 0, %s70
    %s72 = sphi 0, %s70
    %s73 = sphi 0, %s72
    %s87 = sphi 0, %s73
    %s91 = sphi 0, %s91
    %s93 = sphi 0, %s91
    %s94 = sphi 0, %s93
    %s108 = sphi 0, %s94
    %s112 = sphi 0, %s112
    %s114 = sphi 0, %s112
    %s115 = sphi 0, %s114
    %s129 = sphi 0, %s115
    %s133 = sphi 0, %s133
    %s135 = sphi 0, %s133
    %s136 = sphi 0, %s135
    %s150 = sphi 0, %s136
    %s154 = sphi 0, %s154
    %s156 = sphi 0, %s154
    %s157 = sphi 0, %s156
    %s171 = sphi 0, %s157
    %s177 = sphi 0, %s179
    %s180 = sphi 0, %s177
    %s181 = sphi 0, %s180
    %s197 = sphi 0, %s181
    %s203 = sphi 0, %s205
    %s206 = sphi 0, %s203
    %s207 = sphi 0, %s206
    %s223 = sphi 0, %s207
  $region4: #{conv_block2_forward.4} parent=0 // loop_header_branch
    %18 = sbr.rel (%p16) target = $region8
  $region5: #{conv_block2_forward.4} parent=0 // loop_body
    %s20 = ssub.s32 %s15, 1
    %s21 = ssub.s32 %s15, 2
    %s22 = sadd.s32 %s15, 1
    %s23 = ssub.s32 %s15, %s22
    %p24 = scmp.eq.s32.totalorder %s23, 0
    %s26 = sadd.s32 %s25, 1
    %s27 = scalar_select %p24, %s25, %s26
    %p30 = pneg %p24
    %p31 = scmp.eq.s32.totalorder %s15, 1
    %p32 = por %p30, %p31
    %p33 = scmp.ne.s32.totalorder %s25, %s28
    %p34 = scmp.eq.s32.totalorder %s15, 0
    %p35 = por %p33, %p34
    %p36 = scmp.ne.s32.totalorder %s25, %s28
    %p37 = scmp.eq.s32.totalorder %s20, 1
    %p38 = por %p36, %p37
    %p39 = scmp.ne.s32.totalorder %s28, %s29
    %p40 = scmp.eq.s32.totalorder %s20, 0
    %p41 = por %p39, %p40
    %p42 = scmp.ne.s32.totalorder %s28, %s29
    %p43 = scmp.eq.s32.totalorder %s21, 1
    %p44 = por %p42, %p43
    %p46 = scmp.ne.s32.totalorder %s29, %s45
    %p47 = scmp.eq.s32.totalorder %s21, 0
    %p48 = por %p46, %p47
    %s50 = sadd.s32 %s49, 1
    %p53 = scmp.eq.s32.totalorder %s15, 1
    %p54 = scmp.ne.s32.totalorder %s49, %s51
    %p55 = scmp.eq.s32.totalorder %s15, 0
    %p56 = por %p54, %p55
    %p57 = scmp.ne.s32.totalorder %s49, %s51
    %p58 = scmp.eq.s32.totalorder %s20, 1
    %p59 = por %p57, %p58
    %p60 = scmp.ne.s32.totalorder %s51, %s52
    %p61 = scmp.eq.s32.totalorder %s20, 0
    %p62 = por %p60, %p61
    %p63 = scmp.ne.s32.totalorder %s51, %s52
    %p64 = scmp.eq.s32.totalorder %s21, 1
    %p65 = por %p63, %p64
    %p67 = scmp.ne.s32.totalorder %s52, %s66
    %p68 = scmp.eq.s32.totalorder %s21, 0
    %p69 = por %p67, %p68
    %s71 = sadd.s32 %s70, 1
    %p74 = scmp.eq.s32.totalorder %s15, 1
    %p75 = scmp.ne.s32.totalorder %s70, %s72
    %p76 = scmp.eq.s32.totalorder %s15, 0
    %p77 = por %p75, %p76
    %p78 = scmp.ne.s32.totalorder %s70, %s72
    %p79 = scmp.eq.s32.totalorder %s20, 1
    %p80 = por %p78, %p79
    %p81 = scmp.ne.s32.totalorder %s72, %s73
    %p82 = scmp.eq.s32.totalorder %s20, 0
    %p83 = por %p81, %p82
    %p84 = scmp.ne.s32.totalorder %s72, %s73
    %p85 = scmp.eq.s32.totalorder %s21, 1
    %p86 = por %p84, %p85
    %p88 = scmp.ne.s32.totalorder %s73, %s87
    %p89 = scmp.eq.s32.totalorder %s21, 0
    %p90 = por %p88, %p89
    %s92 = sadd.s32 %s91, 1
    %p95 = scmp.eq.s32.totalorder %s15, 1
    %p96 = scmp.ne.s32.totalorder %s91, %s93
    %p97 = scmp.eq.s32.totalorder %s15, 0
    %p98 = por %p96, %p97
    %p99 = scmp.ne.s32.totalorder %s91, %s93
    %p100 = scmp.eq.s32.totalorder %s20, 1
    %p101 = por %p99, %p100
    %p102 = scmp.ne.s32.totalorder %s93, %s94
    %p103 = scmp.eq.s32.totalorder %s20, 0
    %p104 = por %p102, %p103
    %p105 = scmp.ne.s32.totalorder %s93, %s94
    %p106 = scmp.eq.s32.totalorder %s21, 1
    %p107 = por %p105, %p106
    %p109 = scmp.ne.s32.totalorder %s94, %s108
    %p110 = scmp.eq.s32.totalorder %s21, 0
    %p111 = por %p109, %p110
    %s113 = sadd.s32 %s112, 1
    %p116 = scmp.eq.s32.totalorder %s15, 1
    %p117 = scmp.ne.s32.totalorder %s112, %s114
    %p118 = scmp.eq.s32.totalorder %s15, 0
    %p119 = por %p117, %p118
    %p120 = scmp.ne.s32.totalorder %s112, %s114
    %p121 = scmp.eq.s32.totalorder %s20, 1
    %p122 = por %p120, %p121
    %p123 = scmp.ne.s32.totalorder %s114, %s115
    %p124 = scmp.eq.s32.totalorder %s20, 0
    %p125 = por %p123, %p124
    %p126 = scmp.ne.s32.totalorder %s114, %s115
    %p127 = scmp.eq.s32.totalorder %s21, 1
    %p128 = por %p126, %p127
    %p130 = scmp.ne.s32.totalorder %s115, %s129
    %p131 = scmp.eq.s32.totalorder %s21, 0
    %p132 = por %p130, %p131
    %s134 = sadd.s32 %s133, 1
    %p137 = scmp.eq.s32.totalorder %s15, 1
    %p138 = scmp.ne.s32.totalorder %s133, %s135
    %p139 = scmp.eq.s32.totalorder %s15, 0
    %p140 = por %p138, %p139
    %p141 = scmp.ne.s32.totalorder %s133, %s135
    %p142 = scmp.eq.s32.totalorder %s20, 1
    %p143 = por %p141, %p142
    %p144 = scmp.ne.s32.totalorder %s135, %s136
    %p145 = scmp.eq.s32.totalorder %s20, 0
    %p146 = por %p144, %p145
    %p147 = scmp.ne.s32.totalorder %s135, %s136
    %p148 = scmp.eq.s32.totalorder %s21, 1
    %p149 = por %p147, %p148
    %p151 = scmp.ne.s32.totalorder %s136, %s150
    %p152 = scmp.eq.s32.totalorder %s21, 0
    %p153 = por %p151, %p152
    %s155 = sadd.s32 %s154, 1
    %p158 = scmp.eq.s32.totalorder %s15, 1
    %p159 = scmp.ne.s32.totalorder %s154, %s156
    %p160 = scmp.eq.s32.totalorder %s15, 0
    %p161 = por %p159, %p160
    %p162 = scmp.ne.s32.totalorder %s154, %s156
    %p163 = scmp.eq.s32.totalorder %s20, 1
    %p164 = por %p162, %p163
    %p165 = scmp.ne.s32.totalorder %s156, %s157
    %p166 = scmp.eq.s32.totalorder %s20, 0
    %p167 = por %p165, %p166
    %p168 = scmp.ne.s32.totalorder %s156, %s157
    %p169 = scmp.eq.s32.totalorder %s21, 1
    %p170 = por %p168, %p169
    %p172 = scmp.ne.s32.totalorder %s157, %s171
    %p173 = scmp.eq.s32.totalorder %s21, 0
    %p174 = por %p172, %p173
    %s175 = ssub.s32 %s15, %s22
    %p176 = scmp.eq.s32.totalorder %s175, 0
    %s178 = sadd.s32 %s177, 1
    %s179 = scalar_select %p176, %s177, %s178
    %p182 = pneg %p176
    %p183 = scmp.eq.s32.totalorder %s15, 1
    %p184 = por %p182, %p183
    %p185 = scmp.ne.s32.totalorder %s177, %s180
    %p186 = scmp.eq.s32.totalorder %s15, 0
    %p187 = por %p185, %p186
    %p188 = scmp.ne.s32.totalorder %s177, %s180
    %p189 = scmp.eq.s32.totalorder %s20, 1
    %p190 = por %p188, %p189
    %p191 = scmp.ne.s32.totalorder %s180, %s181
    %p192 = scmp.eq.s32.totalorder %s20, 0
    %p193 = por %p191, %p192
    %p194 = scmp.ne.s32.totalorder %s180, %s181
    %p195 = scmp.eq.s32.totalorder %s21, 1
    %p196 = por %p194, %p195
    %p198 = scmp.ne.s32.totalorder %s181, %s197
    %p199 = scmp.eq.s32.totalorder %s21, 0
    %p200 = por %p198, %p199
    %s201 = ssub.s32 %s15, %s22
    %p202 = scmp.eq.s32.totalorder %s201, 0
    %s204 = sadd.s32 %s203, 1
    %s205 = scalar_select %p202, %s203, %s204
    %p208 = pneg %p202
    %p209 = scmp.eq.s32.totalorder %s15, 1
    %p210 = por %p208, %p209
    %p211 = scmp.ne.s32.totalorder %s203, %s206
    %p212 = scmp.eq.s32.totalorder %s15, 0
    %p213 = por %p211, %p212
    %p214 = scmp.ne.s32.totalorder %s203, %s206
    %p215 = scmp.eq.s32.totalorder %s20, 1
    %p216 = por %p214, %p215
    %p217 = scmp.ne.s32.totalorder %s206, %s207
    %p218 = scmp.eq.s32.totalorder %s20, 0
    %p219 = por %p217, %p218
    %p220 = scmp.ne.s32.totalorder %s206, %s207
    %p221 = scmp.eq.s32.totalorder %s21, 1
    %p222 = por %p220, %p221
    %p224 = scmp.ne.s32.totalorder %s207, %s223
    %p225 = scmp.eq.s32.totalorder %s21, 0
    %p226 = por %p224, %p225
    %p227 = scmp.le.s32.totalorder 1, %s15
    %p228 = scmp.lt.s32.totalorder %s15, 3
    %p229 = pnand %p227, %p228
    %p230 = pneg %p229
    // Predicated region
    $region9: #{conv_block2_forward.4} parent=5 // pred_check
      _
    $region10: #{conv_block2_forward.4} parent=5 // pred_check_branch
      %232 = sbr.rel (%p229) target = $region12
    $region11: #{conv_block2_forward.4} parent=5 // pred_region
      %s233 = ssub.s32 %s15, 1
      // Predicated region
      $region13: #{conv_block2_forward.4} parent=11 // pred_check
        %p234 = pneg %p62
      $region14: #{conv_block2_forward.4} parent=11 // pred_check_branch
        %236 = sbr.rel (%p234) target = $region16
      $region15: #{conv_block2_forward.4} parent=11 // pred_region
        _
      $region16: #{conv_block2_forward.4} parent=11 // pred_fallthru
        _
      // Predicated region
      $region17: #{conv_block2_forward.4} parent=11 // pred_check
        %p237 = pneg %p83
      $region18: #{conv_block2_forward.4} parent=11 // pred_check_branch
        %239 = sbr.rel (%p237) target = $region20
      $region19: #{conv_block2_forward.4} parent=11 // pred_region
        _
      $region20: #{conv_block2_forward.4} parent=11 // pred_fallthru
        _
      // Predicated region
      $region21: #{conv_block2_forward.4} parent=11 // pred_check
        %p240 = pneg %p104
      $region22: #{conv_block2_forward.4} parent=11 // pred_check_branch
        %242 = sbr.rel (%p240) target = $region24
      $region23: #{conv_block2_forward.4} parent=11 // pred_region
        _
      $region24: #{conv_block2_forward.4} parent=11 // pred_fallthru
        _
      // Predicated region
      $region25: #{conv_block2_forward.4} parent=11 // pred_check
        %p243 = pneg %p125
      $region26: #{conv_block2_forward.4} parent=11 // pred_check_branch
        %245 = sbr.rel (%p243) target = $region28
      $region27: #{conv_block2_forward.4} parent=11 // pred_region
        _
      $region28: #{conv_block2_forward.4} parent=11 // pred_fallthru
        _
      // Predicated region
      $region29: #{conv_block2_forward.4} parent=11 // pred_check
        %p246 = pneg %p146
      $region30: #{conv_block2_forward.4} parent=11 // pred_check_branch
        %248 = sbr.rel (%p246) target = $region32
      $region31: #{conv_block2_forward.4} parent=11 // pred_region
        _
      $region32: #{conv_block2_forward.4} parent=11 // pred_fallthru
        _
      // Predicated region
      $region33: #{conv_block2_forward.4} parent=11 // pred_check
        %p249 = pneg %p167
      $region34: #{conv_block2_forward.4} parent=11 // pred_check_branch
        %251 = sbr.rel (%p249) target = $region36
      $region35: #{conv_block2_forward.4} parent=11 // pred_region
        _
      $region36: #{conv_block2_forward.4} parent=11 // pred_fallthru
        _
    $region12: #{conv_block2_forward.4} parent=5 // pred_fallthru
      _
    %p252 = scmp.lt.s32.totalorder %s15, 2
    // Predicated region
    $region37: #{conv_block2_forward.4} parent=5 // pred_check
      %p253 = pneg %p252
    $region38: #{conv_block2_forward.4} parent=5 // pred_check_branch
      %255 = sbr.rel (%p253) target = $region40
    $region39: #{conv_block2_forward.4} parent=5 // pred_region
      // Predicated region
      $region41: #{conv_block2_forward.4} parent=39 // pred_check
        %p256 = pneg %p35
      $region42: #{conv_block2_forward.4} parent=39 // pred_check_branch
        %258 = sbr.rel (%p256) target = $region44
      $region43: #{conv_block2_forward.4} parent=39 // pred_region
        %p259 = scmp.lt.s32.totalorder %s15, 1
        %s260 = scalar_select %p259, %s15, 1
        %s261 = smul.addr %s260, 8
        %s262 = scalar_lea.vmem %s0, %s261
      $region44: #{conv_block2_forward.4} parent=39 // pred_fallthru
        _
    $region40: #{conv_block2_forward.4} parent=5 // pred_fallthru
      _
    %p263 = scmp.le.s32.totalorder 1, %s15
    %p264 = scmp.lt.s32.totalorder %s15, 3
    %p265 = pnand %p263, %p264
    %p266 = pneg %p265
    // Predicated region
    $region45: #{conv_block2_forward.4} parent=5 // pred_check
      _
    $region46: #{conv_block2_forward.4} parent=5 // pred_check_branch
      %268 = sbr.rel (%p265) target = $region48
    $region47: #{conv_block2_forward.4} parent=5 // pred_region
      %s269 = ssub.s32 %s15, 1
      %p270 = scmp.lt.s32.totalorder %s20, 1
      %s271 = scalar_select %p270, %s20, 1
      %s272 = smul.addr %s271, 8
      %s273 = scalar_lea.vmem %s0, %s272
      %p274 = pneg %p41
      %p275 = pneg %p38
      %p276 = pneg %p62
      %p277 = pneg %p59
      %p278 = pneg %p83
      %p279 = pneg %p80
      %p280 = pneg %p104
      %p281 = pneg %p101
      %p282 = pneg %p125
      %p283 = pneg %p122
      %p284 = pneg %p146
      %p285 = pneg %p143
      %p286 = pneg %p167
      %p287 = pneg %p164
      %p288 = pneg %p193
      %p289 = pneg %p190
      %p290 = scmp.lt.s32.totalorder %s20, 1
      %s291 = scalar_select %p290, %s20, 1
      %s292 = smul.addr %s291, 8
      %s293 = scalar_lea.vmem %s7, %s292
      %p294 = pneg %p219
      %p295 = pneg %p216
      %p296 = scmp.lt.s32.totalorder %s20, 1
      %s297 = scalar_select %p296, %s20, 1
      %s298 = smul.addr %s297, 2
      %s299 = scalar_lea.vmem %s8, %s298
      %p300 = scmp.lt.s32.totalorder %s20, 1
      %s301 = scalar_select %p300, %s20, 1
      %s302 = smul.addr %s301, 8
      %s303 = scalar_lea.vmem %s0, %s302
      %p304 = scmp.lt.s32.totalorder %s20, 1
      %s305 = scalar_select %p304, %s20, 1
      %s306 = smul.addr %s305, 8
      %s307 = scalar_lea.vmem %s7, %s306
      %p308 = scmp.lt.s32.totalorder %s20, 1
      %s309 = scalar_select %p308, %s20, 1
      %s310 = smul.addr %s309, 2
      %s311 = scalar_lea.vmem %s8, %s310
      %v312 = vld [vmem:[%s303] sm:$0xff]
      %v313 = vld [vmem:[%s4] sm:$0x1]
      %v315 = vlaneseq
      %v316 = vshrl.u32 %v315, 7
      %v317 = vsub.s32 0, %v316
      %v318 = vrot.slane %v313, %v317
      %v320 = vmul.f32 %v312, %v318
      %v321 = vld [vmem:[%s5] sm:$0x1]
      %v323 = vlaneseq
      %v324 = vshrl.u32 %v323, 7
      %v325 = vsub.s32 0, %v324
      %v326 = vrot.slane %v321, %v325
      %v328 = vadd.f32 %v320, %v326
      %vm329 = vcmp.gt.f32.partialorder %v328, 0.0
      %v330 = vld [vmem:[%s6] sm:$0x1]
      %v332 = vlaneseq
      %v333 = vshrl.u32 %v332, 7
      %v334 = vsub.s32 0, %v333
      %v335 = vrot.slane %v330, %v334
      %v337 = vmul.f32 %v335, %v328
      %v338 = vsel %vm329, %v328, %v337
      %v340 = vrot.slane %v338, 7
      %vm342 = vcmask 1040384
      %v343 = vsel %vm342, 0.0, %v340
      %v344 = vrot.slane %v338, 1
      %vm346 = vcmask 1046528
      %v347 = vsel %vm346, %v344, 0.0
      %v348 = vld [vmem:[%s2] sm:$0xff]
      %v349 = vld [vmem:[%s2 + $0x8] sm:$0xff]
      %v350 = vld [vmem:[%s2 + $0x10] sm:$0xff]
      %v351 = vld [vmem:[%s2 + $0x18] sm:$0xff]
      %v352 = vld [vmem:[%s2 + $0x20] sm:$0xff]
      %v353 = vld [vmem:[%s2 + $0x28] sm:$0xff]
      %v354 = vld [vmem:[%s2 + $0x30] sm:$0xff]
      %v355 = vld [vmem:[%s2 + $0x38] sm:$0xff]
      %v356 = vld [vmem:[%s2 + $0x40] sm:$0xff]
      %v357 = vld [vmem:[%s2 + $0x48] sm:$0xff]
      %v358 = vld [vmem:[%s2 + $0x50] sm:$0xff]
      %v359 = vld [vmem:[%s2 + $0x58] sm:$0xff]
      %v360 = vld [vmem:[%s2 + $0x60] sm:$0xff]
      %v361 = vld [vmem:[%s2 + $0x68] sm:$0xff]
      %v362 = vld [vmem:[%s2 + $0x70] sm:$0xff]
      %v363 = vld [vmem:[%s2 + $0x78] sm:$0xff]
      %v364 = vld [vmem:[%s1] sm:$0xff]
      %v365 = vld [vmem:[%s1 + $0x8] sm:$0xff]
      %v366 = vld [vmem:[%s1 + $0x10] sm:$0xff]
      %v367 = vld [vmem:[%s1 + $0x18] sm:$0xff]
      %v368 = vld [vmem:[%s1 + $0x20] sm:$0xff]
      %v369 = vld [vmem:[%s1 + $0x28] sm:$0xff]
      %v370 = vld [vmem:[%s1 + $0x30] sm:$0xff]
      %v371 = vld [vmem:[%s1 + $0x38] sm:$0xff]
      %v372 = vld [vmem:[%s1 + $0x40] sm:$0xff]
      %v373 = vld [vmem:[%s1 + $0x48] sm:$0xff]
      %v374 = vld [vmem:[%s1 + $0x50] sm:$0xff]
      %v375 = vld [vmem:[%s1 + $0x58] sm:$0xff]
      %v376 = vld [vmem:[%s1 + $0x60] sm:$0xff]
      %v377 = vld [vmem:[%s1 + $0x68] sm:$0xff]
      %v378 = vld [vmem:[%s1 + $0x70] sm:$0xff]
      %v379 = vld [vmem:[%s1 + $0x78] sm:$0xff]
      %380 = vmatprep.subr.mxu0 0.0
      %381 = vmatpush1.msra.mxu0 %v364
      %382 = vmatprep.subr.mxu0 0.0
      %383 = vmatpush1.msra.mxu0 %v365
      %384 = vmatprep.subr.mxu0 0.0
      %385 = vmatpush1.msra.mxu0 %v366
      %386 = vmatprep.subr.mxu0 0.0
      %387 = vmatpush1.msra.mxu0 %v367
      %388 = vmatprep.subr.mxu0 0.0
      %389 = vmatpush1.msra.mxu0 %v368
      %390 = vmatprep.subr.mxu0 0.0
      %391 = vmatpush1.msra.mxu0 %v369
      %392 = vmatprep.subr.mxu0 0.0
      %393 = vmatpush1.msra.mxu0 %v370
      %394 = vmatprep.subr.mxu0 0.0
      %395 = vmatpush1.msra.mxu0 %v371
      %396 = vmatprep.subr.mxu0 0.0
      %397 = vmatpush1.msra.mxu0 %v372
      %398 = vmatprep.subr.mxu0 0.0
      %399 = vmatpush1.msra.mxu0 %v373
      %400 = vmatprep.subr.mxu0 0.0
      %401 = vmatpush1.msra.mxu0 %v374
      %402 = vmatprep.subr.mxu0 0.0
      %403 = vmatpush1.msra.mxu0 %v375
      %404 = vmatprep.subr.mxu0 0.0
      %405 = vmatpush1.msra.mxu0 %v376
      %406 = vmatprep.subr.mxu0 0.0
      %407 = vmatpush1.msra.mxu0 %v377
      %408 = vmatprep.subr.mxu0 0.0
      %409 = vmatpush1.msra.mxu0 %v378
      %410 = vmatprep.subr.mxu0 0.0
      %411 = vmatpush1.msra.mxu0 %v379
      %412 = vmatprep.subr.mxu0 0.0
      %413 = vmatpush1.msra.mxu0 0.0
      %414 = vmatprep.subr.mxu0 0.0
      %415 = vmatpush1.msra.mxu0 0.0
      %416 = vmatprep.subr.mxu0 0.0
      %417 = vmatpush1.msra.mxu0 0.0
      %418 = vmatprep.subr.mxu0 0.0
      %419 = vmatpush1.msra.mxu0 0.0
      %420 = vmatprep.subr.mxu0 0.0
      %421 = vmatpush1.msra.mxu0 0.0
      %422 = vmatprep.subr.mxu0 0.0
      %423 = vmatpush1.msra.mxu0 0.0
      %424 = vmatprep.subr.mxu0 0.0
      %425 = vmatpush1.msra.mxu0 0.0
      %426 = vmatprep.subr.mxu0 0.0
      %427 = vmatpush1.msra.mxu0 0.0
      %428 = vmatprep.subr.mxu0 0.0
      %429 = vmatpush1.msra.mxu0 0.0
      %430 = vmatprep.subr.mxu0 0.0
      %431 = vmatpush1.msra.mxu0 0.0
      %432 = vmatprep.subr.mxu0 0.0
      %433 = vmatpush1.msra.mxu0 0.0
      %434 = vmatprep.subr.mxu0 0.0
      %435 = vmatpush1.msra.mxu0 0.0
      %436 = vmatprep.subr.mxu0 0.0
      %437 = vmatpush1.msra.mxu0 0.0
      %438 = vmatprep.subr.mxu0 0.0
      %439 = vmatpush1.msra.mxu0 0.0
      %440 = vmatprep.subr.mxu0 0.0
      %441 = vmatpush1.msra.mxu0 0.0
      %442 = vmatprep.subr.mxu0 0.0
      %443 = vmatpush1.msra.mxu0 0.0
      %444 = vmatprep.mubr.f32.mxu0 0.0
      %445 = vmatmul.mubr.f32.gmra.mrb[0].mxu0 %v343
      %v446 = vpop.f32.mrb[0].mxu0
      %v447 = vadd.f32 0.0, %v446
      %v448 = vpop.f32.mrb[0].mxu0
      %449 = vdwg.mxu0
      %450 = vmatprep.subr.mxu0 0.0
      %451 = vmatpush1.msra.mxu0 %v348
      %452 = vmatprep.subr.mxu0 0.0
      %453 = vmatpush1.msra.mxu0 %v349
      %454 = vmatprep.subr.mxu0 0.0
      %455 = vmatpush1.msra.mxu0 %v350
      %456 = vmatprep.subr.mxu0 0.0
      %457 = vmatpush1.msra.mxu0 %v351
      %458 = vmatprep.subr.mxu0 0.0
      %459 = vmatpush1.msra.mxu0 %v352
      %460 = vmatprep.subr.mxu0 0.0
      %461 = vmatpush1.msra.mxu0 %v353
      %462 = vmatprep.subr.mxu0 0.0
      %463 = vmatpush1.msra.mxu0 %v354
      %464 = vmatprep.subr.mxu0 0.0
      %465 = vmatpush1.msra.mxu0 %v355
      %466 = vmatprep.subr.mxu0 0.0
      %467 = vmatpush1.msra.mxu0 %v356
      %468 = vmatprep.subr.mxu0 0.0
      %469 = vmatpush1.msra.mxu0 %v357
      %470 = vmatprep.subr.mxu0 0.0
      %471 = vmatpush1.msra.mxu0 %v358
      %472 = vmatprep.subr.mxu0 0.0
      %473 = vmatpush1.msra.mxu0 %v359
      %474 = vmatprep.subr.mxu0 0.0
      %475 = vmatpush1.msra.mxu0 %v360
      %476 = vmatprep.subr.mxu0 0.0
      %477 = vmatpush1.msra.mxu0 %v361
      %478 = vmatprep.subr.mxu0 0.0
      %479 = vmatpush1.msra.mxu0 %v362
      %480 = vmatprep.subr.mxu0 0.0
      %481 = vmatpush1.msra.mxu0 %v363
      %482 = vmatprep.subr.mxu0 0.0
      %483 = vmatpush1.msra.mxu0 0.0
      %484 = vmatprep.subr.mxu0 0.0
      %485 = vmatpush1.msra.mxu0 0.0
      %486 = vmatprep.subr.mxu0 0.0
      %487 = vmatpush1.msra.mxu0 0.0
      %488 = vmatprep.subr.mxu0 0.0
      %489 = vmatpush1.msra.mxu0 0.0
      %490 = vmatprep.subr.mxu0 0.0
      %491 = vmatpush1.msra.mxu0 0.0
      %492 = vmatprep.subr.mxu0 0.0
      %493 = vmatpush1.msra.mxu0 0.0
      %494 = vmatprep.subr.mxu0 0.0
      %495 = vmatpush1.msra.mxu0 0.0
      %496 = vmatprep.subr.mxu0 0.0
      %497 = vmatpush1.msra.mxu0 0.0
      %498 = vmatprep.subr.mxu0 0.0
      %499 = vmatpush1.msra.mxu0 0.0
      %500 = vmatprep.subr.mxu0 0.0
      %501 = vmatpush1.msra.mxu0 0.0
      %502 = vmatprep.subr.mxu0 0.0
      %503 = vmatpush1.msra.mxu0 0.0
      %504 = vmatprep.subr.mxu0 0.0
      %505 = vmatpush1.msra.mxu0 0.0
      %506 = vmatprep.subr.mxu0 0.0
      %507 = vmatpush1.msra.mxu0 0.0
      %508 = vmatprep.subr.mxu0 0.0
      %509 = vmatpush1.msra.mxu0 0.0
      %510 = vmatprep.subr.mxu0 0.0
      %511 = vmatpush1.msra.mxu0 0.0
      %512 = vmatprep.subr.mxu0 0.0
      %513 = vmatpush1.msra.mxu0 0.0
      %514 = vmatprep.mubr.f32.mxu0 0.0
      %515 = vmatmul.mubr.f32.gmra.mrb[0].mxu0 %v338
      %v516 = vpop.f32.mrb[0].mxu0
      %v517 = vadd.f32 %v447, %v516
      %v518 = vpop.f32.mrb[0].mxu0
      %519 = vdwg.mxu0
      %v520 = vld [vmem:[%s3] sm:$0xff]
      %v521 = vld [vmem:[%s3 + $0x8] sm:$0xff]
      %v522 = vld [vmem:[%s3 + $0x10] sm:$0xff]
      %v523 = vld [vmem:[%s3 + $0x18] sm:$0xff]
      %v524 = vld [vmem:[%s3 + $0x20] sm:$0xff]
      %v525 = vld [vmem:[%s3 + $0x28] sm:$0xff]
      %v526 = vld [vmem:[%s3 + $0x30] sm:$0xff]
      %v527 = vld [vmem:[%s3 + $0x38] sm:$0xff]
      %v528 = vld [vmem:[%s3 + $0x40] sm:$0xff]
      %v529 = vld [vmem:[%s3 + $0x48] sm:$0xff]
      %v530 = vld [vmem:[%s3 + $0x50] sm:$0xff]
      %v531 = vld [vmem:[%s3 + $0x58] sm:$0xff]
      %v532 = vld [vmem:[%s3 + $0x60] sm:$0xff]
      %v533 = vld [vmem:[%s3 + $0x68] sm:$0xff]
      %v534 = vld [vmem:[%s3 + $0x70] sm:$0xff]
      %v535 = vld [vmem:[%s3 + $0x78] sm:$0xff]
      %536 = vmatprep.subr.mxu0 0.0
      %537 = vmatpush1.msra.mxu0 %v520
      %538 = vmatprep.subr.mxu0 0.0
      %539 = vmatpush1.msra.mxu0 %v521
      %540 = vmatprep.subr.mxu0 0.0
      %541 = vmatpush1.msra.mxu0 %v522
      %542 = vmatprep.subr.mxu0 0.0
      %543 = vmatpush1.msra.mxu0 %v523
      %544 = vmatprep.subr.mxu0 0.0
      %545 = vmatpush1.msra.mxu0 %v524
      %546 = vmatprep.subr.mxu0 0.0
      %547 = vmatpush1.msra.mxu0 %v525
      %548 = vmatprep.subr.mxu0 0.0
      %549 = vmatpush1.msra.mxu0 %v526
      %550 = vmatprep.subr.mxu0 0.0
      %551 = vmatpush1.msra.mxu0 %v527
      %552 = vmatprep.subr.mxu0 0.0
      %553 = vmatpush1.msra.mxu0 %v528
      %554 = vmatprep.subr.mxu0 0.0
      %555 = vmatpush1.msra.mxu0 %v529
      %556 = vmatprep.subr.mxu0 0.0
      %557 = vmatpush1.msra.mxu0 %v530
      %558 = vmatprep.subr.mxu0 0.0
      %559 = vmatpush1.msra.mxu0 %v531
      %560 = vmatprep.subr.mxu0 0.0
      %561 = vmatpush1.msra.mxu0 %v532
      %562 = vmatprep.subr.mxu0 0.0
      %563 = vmatpush1.msra.mxu0 %v533
      %564 = vmatprep.subr.mxu0 0.0
      %565 = vmatpush1.msra.mxu0 %v534
      %566 = vmatprep.subr.mxu0 0.0
      %567 = vmatpush1.msra.mxu0 %v535
      %568 = vmatprep.subr.mxu0 0.0
      %569 = vmatpush1.msra.mxu0 0.0
      %570 = vmatprep.subr.mxu0 0.0
      %571 = vmatpush1.msra.mxu0 0.0
      %572 = vmatprep.subr.mxu0 0.0
      %573 = vmatpush1.msra.mxu0 0.0
      %574 = vmatprep.subr.mxu0 0.0
      %575 = vmatpush1.msra.mxu0 0.0
      %576 = vmatprep.subr.mxu0 0.0
      %577 = vmatpush1.msra.mxu0 0.0
      %578 = vmatprep.subr.mxu0 0.0
      %579 = vmatpush1.msra.mxu0 0.0
      %580 = vmatprep.subr.mxu0 0.0
      %581 = vmatpush1.msra.mxu0 0.0
      %582 = vmatprep.subr.mxu0 0.0
      %583 = vmatpush1.msra.mxu0 0.0
      %584 = vmatprep.subr.mxu0 0.0
      %585 = vmatpush1.msra.mxu0 0.0
      %586 = vmatprep.subr.mxu0 0.0
      %587 = vmatpush1.msra.mxu0 0.0
      %588 = vmatprep.subr.mxu0 0.0
      %589 = vmatpush1.msra.mxu0 0.0
      %590 = vmatprep.subr.mxu0 0.0
      %591 = vmatpush1.msra.mxu0 0.0
      %592 = vmatprep.subr.mxu0 0.0
      %593 = vmatpush1.msra.mxu0 0.0
      %594 = vmatprep.subr.mxu0 0.0
      %595 = vmatpush1.msra.mxu0 0.0
      %596 = vmatprep.subr.mxu0 0.0
      %597 = vmatpush1.msra.mxu0 0.0
      %598 = vmatprep.subr.mxu0 0.0
      %599 = vmatpush1.msra.mxu0 0.0
      %600 = vmatprep.mubr.f32.mxu0 0.0
      %601 = vmatmul.mubr.f32.gmra.mrb[0].mxu0 %v347
      %v602 = vpop.f32.mrb[0].mxu0
      %v603 = vadd.f32 0.0, %v602
      %v604 = vpop.f32.mrb[0].mxu0
      %605 = vdwg.mxu0
      %v606 = vadd.f32 %v517, %v603
      %607 = vst [vmem:[%s307] sm:$0xff] %v606
      %v608 = vrot.slane %v606, 4
      %v609 = vadd.f32 %v606, %v608
      %v610 = vrot.slane %v609, 2
      %v611 = vadd.f32 %v609, %v610
      %v612 = vrot.slane %v611, 1
      %v613 = vadd.f32 %v611, %v612
      %v614 = vmul.f32 %v606, %v606
      %v615 = vrot.slane %v614, 4
      %v616 = vadd.f32 %v614, %v615
      %v617 = vrot.slane %v616, 2
      %v618 = vadd.f32 %v616, %v617
      %v619 = vrot.slane %v618, 1
      %v620 = vadd.f32 %v618, %v619
      %v621 = vsel %vm342, %v613, %v620
      %622 = vst [vmem:[%s311] sm:$0x3] %v621
      %p623 = scmp.lt.s32.totalorder %s20, 1
      %s624 = scalar_select %p623, %s20, 1
      %s625 = smul.addr %s624, 8
      %s626 = scalar_lea.vmem %s7, %s625
      %p627 = scmp.lt.s32.totalorder %s20, 1
      %s628 = scalar_select %p627, %s20, 1
      %s629 = smul.addr %s628, 2
      %s630 = scalar_lea.vmem %s8, %s629
      // Predicated region
      $region49: #{conv_block2_forward.4} parent=47 // pred_check
        %p631 = pneg %p190
      $region50: #{conv_block2_forward.4} parent=47 // pred_check_branch
        %633 = sbr.rel (%p631) target = $region52
      $region51: #{conv_block2_forward.4} parent=47 // pred_region
        _
      $region52: #{conv_block2_forward.4} parent=47 // pred_fallthru
        _
      // Predicated region
      $region53: #{conv_block2_forward.4} parent=47 // pred_check
        %p634 = pneg %p216
      $region54: #{conv_block2_forward.4} parent=47 // pred_check_branch
        %636 = sbr.rel (%p634) target = $region56
      $region55: #{conv_block2_forward.4} parent=47 // pred_region
        _
      $region56: #{conv_block2_forward.4} parent=47 // pred_fallthru
        _
    $region48: #{conv_block2_forward.4} parent=5 // pred_fallthru
      _
    %p637 = scmp.le.s32.totalorder 2, %s15
    // Predicated region
    $region57: #{conv_block2_forward.4} parent=5 // pred_check
      %p638 = pneg %p637
    $region58: #{conv_block2_forward.4} parent=5 // pred_check_branch
      %640 = sbr.rel (%p638) target = $region60
    $region59: #{conv_block2_forward.4} parent=5 // pred_region
      %s641 = ssub.s32 %s15, 2
      // Predicated region
      $region61: #{conv_block2_forward.4} parent=59 // pred_check
        %p642 = pneg %p196
      $region62: #{conv_block2_forward.4} parent=59 // pred_check_branch
        %644 = sbr.rel (%p642) target = $region64
      $region63: #{conv_block2_forward.4} parent=59 // pred_region
        %p645 = scmp.lt.s32.totalorder %s21, 1
        %s646 = scalar_select %p645, %s21, 1
        %s647 = smul.addr %s646, 8
        %s648 = scalar_lea.vmem %s7, %s647
      $region64: #{conv_block2_forward.4} parent=59 // pred_fallthru
        _
      // Predicated region
      $region65: #{conv_block2_forward.4} parent=59 // pred_check
        %p649 = pneg %p222
      $region66: #{conv_block2_forward.4} parent=59 // pred_check_branch
        %651 = sbr.rel (%p649) target = $region68
      $region67: #{conv_block2_forward.4} parent=59 // pred_region
        %p652 = scmp.lt.s32.totalorder %s21, 1
        %s653 = scalar_select %p652, %s21, 1
        %s654 = smul.addr %s653, 2
        %s655 = scalar_lea.vmem %s8, %s654
      $region68: #{conv_block2_forward.4} parent=59 // pred_fallthru
        _
    $region60: #{conv_block2_forward.4} parent=5 // pred_fallthru
      _
  $region6: #{conv_block2_forward.4} parent=0 // loop_footer
    %s19 = sadd.s32 1, %s15
  $region7: #{conv_block2_forward.4} parent=0 // loop_footer_branch
    %14 = sbr.rel target = $region3
  $region8: #{conv_block2_forward.4} parent=0 // loop_exit
    _

</llo_original>
